<compile_context>
chip_gen: v5e
topology: v5e:2x2
jax: 0.10.0
libtpu: 0.0.40
codegen_flags: <defaults>
</compile_context>

<pallas_src>
import functools

import jax
import jax.numpy as jnp
from jax.experimental import pallas as pl
from jax.experimental.pallas import tpu as pltpu


# --------------------------------------------------------------------------
# Graph Laplacian buffers (host-side, computed once — not part of the kernel)
# --------------------------------------------------------------------------
def calculate_laplacian_with_self_loop(adj, alpha=-0.5):
    # TODO(synk): the reference repo's `alpha` overload is not shown; we assume
    # D^alpha (A + I) D^alpha (symmetric for symmetric adj), which equals the
    # classic symmetric normalization at alpha = -0.5.
    a = adj + jnp.eye(adj.shape[0], dtype=adj.dtype)
    deg = a.sum(axis=1)
    d_pow = jnp.power(deg, alpha)
    d_pow = jnp.where(jnp.isinf(d_pow), 0.0, d_pow)
    return (a * d_pow[:, None]) * d_pow[None, :]


# --------------------------------------------------------------------------
# Fused TGCNCell kernel
# --------------------------------------------------------------------------
def _tgcn_cell_kernel(x_ref, h_ref, lsym_ref, lrw_ref,
                      w1rh_ref, w1uh_ref, w1r0_ref, w1u0_ref,
                      b1r_ref, b1u_ref,
                      wmh_ref, wm0_ref, bm_ref,
                      wvh_ref, wv0_ref, bv_ref,
                      out_ref, *, hidden_dim, lamda, batch_tile, mxu_dtype):
    H = hidden_dim
    bt = batch_tile
    N = h_ref.shape[1]
    f32 = jnp.float32
    cdt = mxu_dtype

    lsym = lsym_ref[...]          # (N, N)  MXU dtype — conv1 + RTGCN mean branch
    lrw = lrw_ref[...]            # (N, N)  MXU dtype — RTGCN var branch
    w1rh = w1rh_ref[...]          # (H, H)  r-columns of W1, hidden rows
    w1uh = w1uh_ref[...]          # (H, H)  u-columns of W1, hidden rows
    w1r0 = w1r0_ref[...]          # (1, H)  f32, r-columns of W1, input row
    w1u0 = w1u0_ref[...]          # (1, H)  f32
    wmh = wmh_ref[...]            # (H, H)
    wvh = wvh_ref[...]            # (H, H)
    wm0 = wm0_ref[...]            # (1, H)  f32 (already scaled by inputs_weights_mean)
    wv0 = wv0_ref[...]            # (1, H)  f32 (already scaled by inputs_weights_var)
    b1r = b1r_ref[...]            # (1, bt*H) f32 (pre-tiled in the wrapper)
    b1u = b1u_ref[...]            # (1, bt*H) f32
    # Hoisted broadcasts (JAX does not CSE broadcast_in_dim).
    bm = jnp.broadcast_to(bm_ref[...], (N, H))
    bv = jnp.broadcast_to(bv_ref[...], (N, H))

    h = h_ref[...]                                  # (bt, N, 2H) f32
    hm3 = h[:, :, :H]                               # hidden mean
    hv3 = h[:, :, H:]                               # hidden var
    xcol = [x_ref[b] for b in range(bt)]            # each (N, 1) f32

    # ---- graph_conv1: sigmoid( L_sym @ ([x | h_mean] @ W1) + b1 ) ----------
    # (L @ C) @ W == L @ (C @ W): apply the cheap weight matmul first, batched
    # over every row of the tile, then ONE wide Laplacian matmul for all gates.
    hm_flat = hm3.reshape(bt * N, H).astype(cdt)
    yr = jnp.dot(hm_flat, w1rh, preferred_element_type=f32).reshape(bt, N, H)
    yu = jnp.dot(hm_flat, w1uh, preferred_element_type=f32).reshape(bt, N, H)
    # Lane-stacked RHS: batch b occupies lanes [b*H, (b+1)*H); r-half first.
    gate_rhs = jnp.concatenate(
        [yr[b] + xcol[b] * w1r0 for b in range(bt)]
        + [yu[b] + xcol[b] * w1u0 for b in range(bt)], axis=-1)   # (N, 2*bt*H)
    g = jnp.dot(lsym, gate_rhs.astype(cdt), preferred_element_type=f32)
    r = jax.nn.sigmoid(g[:, :bt * H] + b1r)                       # (N, bt*H)
    u = jax.nn.sigmoid(g[:, bt * H:] + b1u)                       # (N, bt*H)

    # Wide (lane-stacked) hidden state matching the gate layout.
    hm_w = jnp.concatenate([hm3[b] for b in range(bt)], axis=-1)  # (N, bt*H)
    hv_w = jnp.concatenate([hv3[b] for b in range(bt)], axis=-1)  # (N, bt*H)
    rhm = r * hm_w
    rhv = r * hv_w

    # ---- graph_conv2 (RTGCN): weights first, then node-weighted Laplacian --
    cm_pieces, cv_pieces = [], []
    for b in range(bt):
        sl = slice(b * H, (b + 1) * H)
        cm_pieces.append(jnp.dot(rhm[:, sl].astype(cdt), wmh,
                                 preferred_element_type=f32) + xcol[b] * wm0 + bm)
        cv_pieces.append(jnp.dot(rhv[:, sl].astype(cdt), wvh,
                                 preferred_element_type=f32) + xcol[b] * wv0 + bv)
    cm = jnp.concatenate(cm_pieces, axis=-1)                      # (N, bt*H)
    cv = jnp.concatenate(cv_pieces, axis=-1)                      # (N, bt*H)
    nw = jnp.exp(-lamda * cv)                                     # node weights (EUP)
    om = jnp.dot(lsym, (cm * nw).astype(cdt), preferred_element_type=f32)
    ov = jnp.dot(lrw, (cv * nw * nw).astype(cdt), preferred_element_type=f32)
    c_mean = jnp.tanh(om)
    c_var = jnp.maximum(ov, 0.0)

    # ---- GRU-style update; one lane-dense (N, 2H) store per batch ----------
    new_mean = u * hm_w + (1.0 - u) * c_mean
    new_var = u * hv_w + (1.0 - u) * c_var
    for b in range(bt):
        sl = slice(b * H, (b + 1) * H)
        out_ref[b] = jnp.concatenate(
            [new_mean[:, sl], new_var[:, sl]], axis=-1).astype(out_ref.dtype)


def _pick_batch_tile(B, N, H):
    """Largest divisor of B (capped at 8) that fits a conservative VMEM budget,
    preferring >= 2 grid steps so both v7x TensorCores get work."""
    per_b = 2 * 4 * N * (4 * H + 128)   # h-in + out blocks (f32, double-buffered) + padded x
    per_b += 16 * 4 * N * H             # live wide f32 intermediates inside the kernel
    budget = 24 * (1 << 20)
    divisors = [d for d in range(1, min(B, 8) + 1) if B % d == 0]
    fit = [d for d in divisors if d * per_b <= budget] or [1]
    bt = max(fit)
    if bt == B and B > 1:
        smaller = [d for d in fit if d < B]
        if smaller:
            bt = max(smaller)
    return bt


def tgcn_cell_forward(inputs, hidden_state, params, *, lamda=1.0,
                      batch_tile=None, mxu_dtype=jnp.bfloat16):
    """inputs: (B, N); hidden_state: (B, N, 2H); returns new hidden (B, N, 2H)."""
    B, N = inputs.shape
    H = params["W1"].shape[0] - 1
    assert hidden_state.shape == (B, N, 2 * H)

    if batch_tile is None:
        batch_tile = _pick_batch_tile(B, N, H)
    assert B % batch_tile == 0
    bt = batch_tile
    grid = (B // bt,)

    f32 = jnp.float32
    x3 = inputs[..., None].astype(f32)                     # (B, N, 1)
    h = hidden_state.astype(f32)                           # (B, N, 2H)

    # MXU operands (default bf16, f32 accumulation); x-rows of the weights,
    # biases and all element-wise math stay f32.
    lsym = params["lap_sym"].astype(mxu_dtype)
    lrw = params["lap_rw"].astype(mxu_dtype)
    W1 = params["W1"]
    w1rh = W1[1:, :H].astype(mxu_dtype)                    # (H, H)  r columns
    w1uh = W1[1:, H:].astype(mxu_dtype)                    # (H, H)  u columns
    w1r0 = W1[0:1, :H].astype(f32)                         # (1, H)
    w1u0 = W1[0:1, H:].astype(f32)                         # (1, H)
    b1 = params["b1"].reshape(1, 2 * H).astype(f32)
    b1r = jnp.tile(b1[:, :H], (1, bt))                     # (1, bt*H)  pre-tiled
    b1u = jnp.tile(b1[:, H:], (1, bt))                     # (1, bt*H)
    wmh = params["Wm"][1:].astype(mxu_dtype)               # (H, H)
    wm0 = (params["w_im"][0, 0] * params["Wm"][0:1]).astype(f32)
    bm = params["bm"].reshape(1, H).astype(f32)
    wvh = params["Wv"][1:].astype(mxu_dtype)               # (H, H)
    wv0 = (params["w_iv"][0, 0] * params["Wv"][0:1]).astype(f32)
    bv = params["bv"].reshape(1, H).astype(f32)

    itemsize = jnp.dtype(mxu_dtype).itemsize
    # Single-buffer the big grid-invariant operands once they are large enough
    # for the saving to matter; their block index never changes.
    inv_mode = pl.Buffered(1) if (2 * itemsize * N * N) > (4 << 20) else None

    def inv(shape):
        imap = lambda i, _s=shape: (0,) * len(_s)
        if inv_mode is None:
            return pl.BlockSpec(shape, imap)
        return pl.BlockSpec(shape, imap, pipeline_mode=inv_mode)

    bat3 = lambda i: (i, 0, 0)

    # VMEM budget: invariants (x1 or x2 buffers) + double-buffered batch tiles
    # + headroom for the in-kernel wide intermediates.  Clamped to 64 MiB
    # (v7x physical VMEM); for larger N a K-tiled Laplacian path is needed.
    inv_bufs = 1 if inv_mode is not None else 2
    inv_bytes = 2 * itemsize * N * N + 4 * itemsize * H * H + (64 << 10)
    tile_bytes = 2 * (bt * N * 4 * 4 * H + bt * N * 4 * 128)
    scratch_bytes = 20 * 4 * N * bt * H + (2 << 20)
    vmem_limit = int(min(64 << 20,
                         max(32 << 20,
                             inv_bufs * inv_bytes + tile_bytes + scratch_bytes)))

    flops = B * (8 * N * N * H + 8 * N * H * H)
    transcendentals = B * N * 4 * H
    bytes_accessed = (4 * B * N * (1 + 4 * H)               # x, h, output
                      + 2 * itemsize * N * N                # two Laplacians
                      + 4 * itemsize * H * H                # weight blocks
                      + 4 * (8 * H + 4 * bt * H))           # f32 rows / biases
    cost = pl.CostEstimate(flops=flops, transcendentals=transcendentals,
                           bytes_accessed=bytes_accessed)

    kernel = functools.partial(_tgcn_cell_kernel, hidden_dim=H,
                               lamda=float(lamda), batch_tile=bt,
                               mxu_dtype=mxu_dtype)

    return pl.pallas_call(
        kernel,
        out_shape=jax.ShapeDtypeStruct((B, N, 2 * H), jnp.float32),
        grid_spec=pltpu.PrefetchScalarGridSpec(
            num_scalar_prefetch=0,
            grid=grid,
            in_specs=[
                pl.BlockSpec((bt, N, 1), bat3),          # x
                pl.BlockSpec((bt, N, 2 * H), bat3),      # hidden state
                inv((N, N)), inv((N, N)),                # lsym, lrw
                inv((H, H)), inv((H, H)),                # w1rh, w1uh
                inv((1, H)), inv((1, H)),                # w1r0, w1u0
                inv((1, bt * H)), inv((1, bt * H)),      # b1r, b1u (pre-tiled)
                inv((H, H)), inv((1, H)), inv((1, H)),   # wmh, wm0, bm
                inv((H, H)), inv((1, H)), inv((1, H)),   # wvh, wv0, bv
            ],
            out_specs=pl.BlockSpec((bt, N, 2 * H), bat3),
        ),
        compiler_params=pltpu.CompilerParams(
            dimension_semantics=("parallel",),
            vmem_limit_bytes=vmem_limit),
        cost_estimate=cost,
    )(x3, h, lsym, lrw, w1rh, w1uh, w1r0, w1u0, b1r, b1u,
      wmh, wm0, bm, wvh, wv0, bv)


# --------------------------------------------------------------------------
# Parameter init (mirrors the PyTorch module's reset_parameters)
# --------------------------------------------------------------------------
def init_tgcn_cell_params(key, adj, hidden_dim):
    H = hidden_dim
    k1, k2, k3, k4, k5 = jax.random.split(key, 5)

    def xavier(k, shape):
        bound = (6.0 / (shape[0] + shape[1])) ** 0.5
        return jax.random.uniform(k, shape, jnp.float32, -bound, bound)

    return {
        "lap_sym": calculate_laplacian_with_self_loop(adj, alpha=-0.5),
        "lap_rw": calculate_laplacian_with_self_loop(adj, alpha=-1.0),
        "W1": xavier(k1, (H + 1, 2 * H)),
        "b1": jnp.full((2 * H,), 1.0, jnp.float32),   # graph_conv1 bias=1.0
        "Wm": xavier(k2, (H + 1, H)),
        "bm": jnp.zeros((H,), jnp.float32),
        "Wv": xavier(k3, (H + 1, H)),
        "bv": jnp.zeros((H,), jnp.float32),
        "w_im": xavier(k4, (1, 1)),
        "w_iv": xavier(k5, (1, 1)),
    }


# --------------------------------------------------------------------------
# Pure-JAX transcription of the PyTorch forward (correctness reference)
# --------------------------------------------------------------------------
def _tgcn_gconv_reference(inputs, hidden_state, laplacian, weights, biases):
    B, N = inputs.shape
    G = hidden_state.shape[-1]
    D = weights.shape[1]
    x = inputs.reshape(B, N, 1)
    h = hidden_state.reshape(B, N, G)
    cat = jnp.concatenate([x, h], axis=2)
    cat = jnp.transpose(cat, (1, 2, 0)).reshape(N, (G + 1) * B)
    a_cat = laplacian @ cat
    a_cat = a_cat.reshape(N, G + 1, B)
    a_cat = jnp.transpose(a_cat, (2, 0, 1)).reshape(B * N, G + 1)
    out = a_cat @ weights + biases
    return out.reshape(B, N, D)


def _rtgcn_gconv_reference(inputs, hidden_state, lap0, lap1,
                           Wm, bm, Wv, bv, w_im, w_iv, lamda):
    B, N = inputs.shape
    G = hidden_state.shape[-1] // 2
    hm, hv = jnp.split(hidden_state, 2, axis=-1)
    x = inputs.reshape(B, N, 1)
    cm = jnp.concatenate([x * w_im[0, 0], hm], axis=2).reshape(B * N, G + 1)
    cv = jnp.concatenate([x * w_iv[0, 0], hv], axis=2).reshape(B * N, G + 1)
    cm = cm @ Wm + bm
    cv = cv @ Wv + bv
    nw = jnp.exp(-cv * lamda).reshape(B, N, G)
    nw = jnp.transpose(nw, (1, 2, 0)).reshape(N, G * B)
    cm_l = jnp.transpose(cm.reshape(B, N, G), (1, 2, 0)).reshape(N, G * B)
    cv_l = jnp.transpose(cv.reshape(B, N, G), (1, 2, 0)).reshape(N, G * B)
    om = lap0 @ (cm_l * nw)
    ov = lap1 @ (cv_l * nw * nw)
    om = jnp.transpose(om.reshape(N, G, B), (2, 0, 1))
    ov = jnp.transpose(ov.reshape(N, G, B), (2, 0, 1))
    return jnp.concatenate([om, ov], axis=-1)


def tgcn_cell_reference(inputs, hidden_state, params, lamda):
    hm, hv = jnp.split(hidden_state, 2, axis=-1)
    conc = jax.nn.sigmoid(_tgcn_gconv_reference(
        inputs, hm, params["lap_sym"], params["W1"], params["b1"]))
    r, u = jnp.split(conc, 2, axis=-1)
    r2 = jnp.concatenate([r, r], axis=-1)
    c = _rtgcn_gconv_reference(inputs, r2 * hidden_state,
                               params["lap_sym"], params["lap_rw"],
                               params["Wm"], params["bm"],
                               params["Wv"], params["bv"],
                               params["w_im"], params["w_iv"], lamda)
    c_mean, c_var = jnp.split(c, 2, axis=-1)
    c_mean = jnp.tanh(c_mean)
    c_var = jax.nn.relu(c_var)
    new_mean = u * hm + (1.0 - u) * c_mean
    new_var = u * hv + (1.0 - u) * c_var
    return jnp.concatenate([new_mean, new_var], axis=-1)


if __name__ == "__main__":
    B, N, H = 4, 16, 32
    key = jax.random.PRNGKey(0)
    k_adj, k_par, k_in, k_h = jax.random.split(key, 4)

    a = jax.random.uniform(k_adj, (N, N), dtype=jnp.float32)
    adj = ((a + a.T) * 0.5) * (1.0 - jnp.eye(N, dtype=jnp.float32))

    params = init_tgcn_cell_params(k_par, adj, H)
    inputs = jax.random.normal(k_in, (B, N), dtype=jnp.float32)
    hidden_state = jax.random.normal(k_h, (B, N, 2 * H), dtype=jnp.float32)

    out = tgcn_cell_forward(inputs, hidden_state, params, lamda=1.0)
    out = jax.block_until_ready(out)

    ref = tgcn_cell_reference(inputs, hidden_state, params, lamda=1.0)
    assert out.shape == (B, N, 2 * H)
    max_err = float(jnp.max(jnp.abs(out - ref)))
    # bf16 MXU operands with f32 accumulation vs. pure-f32 reference.
    assert jnp.allclose(out, ref, atol=5e-2, rtol=5e-2), max_err

    print("KERNEL_OK")
</pallas_src>

<mosaic_0001>
module attributes {stable_mosaic.version = 11 : i64} {
  func.func @_tgcn_cell_kernel(%arg0: i32, %arg1: memref<2x16x1xf32, #tpu.memory_space<vmem>>, %arg2: memref<2x16x64xf32, #tpu.memory_space<vmem>>, %arg3: memref<16x16xbf16, #tpu.memory_space<vmem>>, %arg4: memref<16x16xbf16, #tpu.memory_space<vmem>>, %arg5: memref<32x32xbf16, #tpu.memory_space<vmem>>, %arg6: memref<32x32xbf16, #tpu.memory_space<vmem>>, %arg7: memref<1x32xf32, #tpu.memory_space<vmem>>, %arg8: memref<1x32xf32, #tpu.memory_space<vmem>>, %arg9: memref<1x64xf32, #tpu.memory_space<vmem>>, %arg10: memref<1x64xf32, #tpu.memory_space<vmem>>, %arg11: memref<32x32xbf16, #tpu.memory_space<vmem>>, %arg12: memref<1x32xf32, #tpu.memory_space<vmem>>, %arg13: memref<1x32xf32, #tpu.memory_space<vmem>>, %arg14: memref<32x32xbf16, #tpu.memory_space<vmem>>, %arg15: memref<1x32xf32, #tpu.memory_space<vmem>>, %arg16: memref<1x32xf32, #tpu.memory_space<vmem>>, %arg17: memref<2x16x64xf32, #tpu.memory_space<vmem>>) attributes {dimension_semantics = [#tpu.dimension_semantics<parallel>], iteration_bounds = array<i64: 2>, scalar_prefetch = 0 : i64, scratch_operands = 0 : i64, tpu.core_type = #tpu.core_type<tc>, window_params = [{transform_indices = @transform_0, window_bounds = array<i64: 2, 16, 1>}, {transform_indices = @transform_1, window_bounds = array<i64: 2, 16, 64>}, {pipeline_mode = #tpu.pipeline_mode<synchronous>, transform_indices = @transform_2, window_bounds = array<i64: 16, 16>}, {pipeline_mode = #tpu.pipeline_mode<synchronous>, transform_indices = @transform_3, window_bounds = array<i64: 16, 16>}, {pipeline_mode = #tpu.pipeline_mode<synchronous>, transform_indices = @transform_4, window_bounds = array<i64: 32, 32>}, {pipeline_mode = #tpu.pipeline_mode<synchronous>, transform_indices = @transform_5, window_bounds = array<i64: 32, 32>}, {pipeline_mode = #tpu.pipeline_mode<synchronous>, transform_indices = @transform_6, window_bounds = array<i64: 1, 32>}, {pipeline_mode = #tpu.pipeline_mode<synchronous>, transform_indices = @transform_7, window_bounds = array<i64: 1, 32>}, {pipeline_mode = #tpu.pipeline_mode<synchronous>, transform_indices = @transform_8, window_bounds = array<i64: 1, 64>}, {pipeline_mode = #tpu.pipeline_mode<synchronous>, transform_indices = @transform_9, window_bounds = array<i64: 1, 64>}, {pipeline_mode = #tpu.pipeline_mode<synchronous>, transform_indices = @transform_10, window_bounds = array<i64: 32, 32>}, {pipeline_mode = #tpu.pipeline_mode<synchronous>, transform_indices = @transform_11, window_bounds = array<i64: 1, 32>}, {pipeline_mode = #tpu.pipeline_mode<synchronous>, transform_indices = @transform_12, window_bounds = array<i64: 1, 32>}, {pipeline_mode = #tpu.pipeline_mode<synchronous>, transform_indices = @transform_13, window_bounds = array<i64: 32, 32>}, {pipeline_mode = #tpu.pipeline_mode<synchronous>, transform_indices = @transform_14, window_bounds = array<i64: 1, 32>}, {pipeline_mode = #tpu.pipeline_mode<synchronous>, transform_indices = @transform_15, window_bounds = array<i64: 1, 32>}, {transform_indices = @transform_16, window_bounds = array<i64: 2, 16, 64>}]} {
    %c0 = arith.constant 0 : index
    %c0_0 = arith.constant 0 : index
    %0 = vector.load %arg3[%c0, %c0_0] : memref<16x16xbf16, #tpu.memory_space<vmem>>, vector<16x16xbf16>
    %c0_1 = arith.constant 0 : index
    %c0_2 = arith.constant 0 : index
    %1 = vector.load %arg4[%c0_1, %c0_2] : memref<16x16xbf16, #tpu.memory_space<vmem>>, vector<16x16xbf16>
    %c0_3 = arith.constant 0 : index
    %c0_4 = arith.constant 0 : index
    %2 = vector.load %arg5[%c0_3, %c0_4] : memref<32x32xbf16, #tpu.memory_space<vmem>>, vector<32x32xbf16>
    %c0_5 = arith.constant 0 : index
    %c0_6 = arith.constant 0 : index
    %3 = vector.load %arg6[%c0_5, %c0_6] : memref<32x32xbf16, #tpu.memory_space<vmem>>, vector<32x32xbf16>
    %c0_7 = arith.constant 0 : index
    %c0_8 = arith.constant 0 : index
    %4 = vector.load %arg7[%c0_7, %c0_8] : memref<1x32xf32, #tpu.memory_space<vmem>>, vector<1x32xf32>
    %c0_9 = arith.constant 0 : index
    %c0_10 = arith.constant 0 : index
    %5 = vector.load %arg8[%c0_9, %c0_10] : memref<1x32xf32, #tpu.memory_space<vmem>>, vector<1x32xf32>
    %c0_11 = arith.constant 0 : index
    %c0_12 = arith.constant 0 : index
    %6 = vector.load %arg11[%c0_11, %c0_12] : memref<32x32xbf16, #tpu.memory_space<vmem>>, vector<32x32xbf16>
    %c0_13 = arith.constant 0 : index
    %c0_14 = arith.constant 0 : index
    %7 = vector.load %arg14[%c0_13, %c0_14] : memref<32x32xbf16, #tpu.memory_space<vmem>>, vector<32x32xbf16>
    %c0_15 = arith.constant 0 : index
    %c0_16 = arith.constant 0 : index
    %8 = vector.load %arg12[%c0_15, %c0_16] : memref<1x32xf32, #tpu.memory_space<vmem>>, vector<1x32xf32>
    %c0_17 = arith.constant 0 : index
    %c0_18 = arith.constant 0 : index
    %9 = vector.load %arg15[%c0_17, %c0_18] : memref<1x32xf32, #tpu.memory_space<vmem>>, vector<1x32xf32>
    %c0_19 = arith.constant 0 : index
    %c0_20 = arith.constant 0 : index
    %10 = vector.load %arg9[%c0_19, %c0_20] : memref<1x64xf32, #tpu.memory_space<vmem>>, vector<1x64xf32>
    %c0_21 = arith.constant 0 : index
    %c0_22 = arith.constant 0 : index
    %11 = vector.load %arg10[%c0_21, %c0_22] : memref<1x64xf32, #tpu.memory_space<vmem>>, vector<1x64xf32>
    %c0_23 = arith.constant 0 : index
    %c0_24 = arith.constant 0 : index
    %12 = vector.load %arg13[%c0_23, %c0_24] : memref<1x32xf32, #tpu.memory_space<vmem>>, vector<1x32xf32>
    %13 = vector.shape_cast %12 : vector<1x32xf32> to vector<1x32xf32>
    %14 = vector.broadcast %13 : vector<1x32xf32> to vector<16x32xf32>
    %c0_25 = arith.constant 0 : index
    %c0_26 = arith.constant 0 : index
    %15 = vector.load %arg16[%c0_25, %c0_26] : memref<1x32xf32, #tpu.memory_space<vmem>>, vector<1x32xf32>
    %16 = vector.shape_cast %15 : vector<1x32xf32> to vector<1x32xf32>
    %17 = vector.broadcast %16 : vector<1x32xf32> to vector<16x32xf32>
    %c0_27 = arith.constant 0 : index
    %c0_28 = arith.constant 0 : index
    %c0_29 = arith.constant 0 : index
    %18 = vector.load %arg2[%c0_27, %c0_28, %c0_29] : memref<2x16x64xf32, #tpu.memory_space<vmem>>, vector<2x16x64xf32>
    %19 = vector.extract_strided_slice %18 {offsets = [0, 0, 0], sizes = [2, 16, 32], strides = [1, 1, 1]} : vector<2x16x64xf32> to vector<2x16x32xf32>
    %20 = vector.extract_strided_slice %18 {offsets = [0, 0, 32], sizes = [2, 16, 32], strides = [1, 1, 1]} : vector<2x16x64xf32> to vector<2x16x32xf32>
    %c0_30 = arith.constant 0 : index
    %c0_31 = arith.constant 0 : index
    %c0_32 = arith.constant 0 : index
    %21 = vector.load %arg1[%c0_30, %c0_31, %c0_32] : memref<2x16x1xf32, #tpu.memory_space<vmem>>, vector<1x16x1xf32>
    %22 = vector.shape_cast %21 : vector<1x16x1xf32> to vector<16x1xf32>
    %c1 = arith.constant 1 : index
    %c0_33 = arith.constant 0 : index
    %c0_34 = arith.constant 0 : index
    %23 = vector.load %arg1[%c1, %c0_33, %c0_34] : memref<2x16x1xf32, #tpu.memory_space<vmem>>, vector<1x16x1xf32>
    %24 = vector.shape_cast %23 : vector<1x16x1xf32> to vector<16x1xf32>
    %25 = vector.shape_cast %19 : vector<2x16x32xf32> to vector<32x32xf32>
    %26 = arith.truncf %25 : vector<32x32xf32> to vector<32x32xbf16>
    %cst = arith.constant dense<0.000000e+00> : vector<32x32xf32>
    %27 = tpu.matmul %26, %2, %cst {dimension_numbers = #tpu.dot_dimension_numbers<[1], [0], [0], [1], [0, 0, 1, 1], [], []>} : vector<32x32xbf16>, vector<32x32xbf16>, vector<32x32xf32> -> vector<32x32xf32>
    %28 = vector.shape_cast %27 : vector<32x32xf32> to vector<2x16x32xf32>
    %cst_35 = arith.constant dense<0.000000e+00> : vector<32x32xf32>
    %29 = tpu.matmul %26, %3, %cst_35 {dimension_numbers = #tpu.dot_dimension_numbers<[1], [0], [0], [1], [0, 0, 1, 1], [], []>} : vector<32x32xbf16>, vector<32x32xbf16>, vector<32x32xf32> -> vector<32x32xf32>
    %30 = vector.shape_cast %29 : vector<32x32xf32> to vector<2x16x32xf32>
    %31 = vector.extract_strided_slice %28 {offsets = [0, 0, 0], sizes = [1, 16, 32], strides = [1, 1, 1]} : vector<2x16x32xf32> to vector<1x16x32xf32>
    %32 = vector.shape_cast %31 : vector<1x16x32xf32> to vector<16x32xf32>
    %33 = vector.broadcast %22 : vector<16x1xf32> to vector<16x32xf32>
    %34 = vector.broadcast %4 : vector<1x32xf32> to vector<16x32xf32>
    %35 = arith.mulf %33, %34 : vector<16x32xf32>
    %36 = arith.addf %32, %35 : vector<16x32xf32>
    %37 = vector.extract_strided_slice %28 {offsets = [1, 0, 0], sizes = [1, 16, 32], strides = [1, 1, 1]} : vector<2x16x32xf32> to vector<1x16x32xf32>
    %38 = vector.shape_cast %37 : vector<1x16x32xf32> to vector<16x32xf32>
    %39 = vector.broadcast %24 : vector<16x1xf32> to vector<16x32xf32>
    %40 = vector.broadcast %4 : vector<1x32xf32> to vector<16x32xf32>
    %41 = arith.mulf %39, %40 : vector<16x32xf32>
    %42 = arith.addf %38, %41 : vector<16x32xf32>
    %43 = vector.extract_strided_slice %30 {offsets = [0, 0, 0], sizes = [1, 16, 32], strides = [1, 1, 1]} : vector<2x16x32xf32> to vector<1x16x32xf32>
    %44 = vector.shape_cast %43 : vector<1x16x32xf32> to vector<16x32xf32>
    %45 = vector.broadcast %22 : vector<16x1xf32> to vector<16x32xf32>
    %46 = vector.broadcast %5 : vector<1x32xf32> to vector<16x32xf32>
    %47 = arith.mulf %45, %46 : vector<16x32xf32>
    %48 = arith.addf %44, %47 : vector<16x32xf32>
    %49 = vector.extract_strided_slice %30 {offsets = [1, 0, 0], sizes = [1, 16, 32], strides = [1, 1, 1]} : vector<2x16x32xf32> to vector<1x16x32xf32>
    %50 = vector.shape_cast %49 : vector<1x16x32xf32> to vector<16x32xf32>
    %51 = vector.broadcast %24 : vector<16x1xf32> to vector<16x32xf32>
    %52 = vector.broadcast %5 : vector<1x32xf32> to vector<16x32xf32>
    %53 = arith.mulf %51, %52 : vector<16x32xf32>
    %54 = arith.addf %50, %53 : vector<16x32xf32>
    %55 = tpu.concatenate %36, %42, %48, %54 in 1 : vector<16x32xf32>, vector<16x32xf32>, vector<16x32xf32>, vector<16x32xf32> -> vector<16x128xf32>
    %56 = arith.truncf %55 : vector<16x128xf32> to vector<16x128xbf16>
    %cst_36 = arith.constant dense<0.000000e+00> : vector<16x128xf32>
    %57 = tpu.matmul %0, %56, %cst_36 {dimension_numbers = #tpu.dot_dimension_numbers<[1], [0], [0], [1], [0, 0, 1, 1], [], []>} : vector<16x16xbf16>, vector<16x128xbf16>, vector<16x128xf32> -> vector<16x128xf32>
    %58 = vector.extract_strided_slice %57 {offsets = [0, 0], sizes = [16, 64], strides = [1, 1]} : vector<16x128xf32> to vector<16x64xf32>
    %59 = vector.broadcast %10 : vector<1x64xf32> to vector<16x64xf32>
    %60 = arith.addf %58, %59 : vector<16x64xf32>
    %61 = arith.negf %60 : vector<16x64xf32>
    %62 = math.exp %61 : vector<16x64xf32>
    %cst_37 = arith.constant 1.000000e+00 : f32
    %63 = vector.broadcast %cst_37 : f32 to vector<16x64xf32>
    %64 = arith.addf %63, %62 : vector<16x64xf32>
    %65 = arith.divf %63, %64 : vector<16x64xf32>
    %66 = vector.extract_strided_slice %57 {offsets = [0, 64], sizes = [16, 64], strides = [1, 1]} : vector<16x128xf32> to vector<16x64xf32>
    %67 = vector.broadcast %11 : vector<1x64xf32> to vector<16x64xf32>
    %68 = arith.addf %66, %67 : vector<16x64xf32>
    %69 = arith.negf %68 : vector<16x64xf32>
    %70 = math.exp %69 : vector<16x64xf32>
    %cst_38 = arith.constant 1.000000e+00 : f32
    %71 = vector.broadcast %cst_38 : f32 to vector<16x64xf32>
    %72 = arith.addf %71, %70 : vector<16x64xf32>
    %73 = arith.divf %71, %72 : vector<16x64xf32>
    %74 = vector.extract_strided_slice %19 {offsets = [0, 0, 0], sizes = [1, 16, 32], strides = [1, 1, 1]} : vector<2x16x32xf32> to vector<1x16x32xf32>
    %75 = vector.shape_cast %74 : vector<1x16x32xf32> to vector<16x32xf32>
    %76 = vector.extract_strided_slice %19 {offsets = [1, 0, 0], sizes = [1, 16, 32], strides = [1, 1, 1]} : vector<2x16x32xf32> to vector<1x16x32xf32>
    %77 = vector.shape_cast %76 : vector<1x16x32xf32> to vector<16x32xf32>
    %78 = tpu.concatenate %75, %77 in 1 : vector<16x32xf32>, vector<16x32xf32> -> vector<16x64xf32>
    %79 = vector.extract_strided_slice %20 {offsets = [0, 0, 0], sizes = [1, 16, 32], strides = [1, 1, 1]} : vector<2x16x32xf32> to vector<1x16x32xf32>
    %80 = vector.shape_cast %79 : vector<1x16x32xf32> to vector<16x32xf32>
    %81 = vector.extract_strided_slice %20 {offsets = [1, 0, 0], sizes = [1, 16, 32], strides = [1, 1, 1]} : vector<2x16x32xf32> to vector<1x16x32xf32>
    %82 = vector.shape_cast %81 : vector<1x16x32xf32> to vector<16x32xf32>
    %83 = tpu.concatenate %80, %82 in 1 : vector<16x32xf32>, vector<16x32xf32> -> vector<16x64xf32>
    %84 = arith.mulf %65, %78 : vector<16x64xf32>
    %85 = arith.mulf %65, %83 : vector<16x64xf32>
    %86 = vector.extract_strided_slice %84 {offsets = [0, 0], sizes = [16, 32], strides = [1, 1]} : vector<16x64xf32> to vector<16x32xf32>
    %87 = arith.truncf %86 : vector<16x32xf32> to vector<16x32xbf16>
    %cst_39 = arith.constant dense<0.000000e+00> : vector<16x32xf32>
    %88 = tpu.matmul %87, %6, %cst_39 {dimension_numbers = #tpu.dot_dimension_numbers<[1], [0], [0], [1], [0, 0, 1, 1], [], []>} : vector<16x32xbf16>, vector<32x32xbf16>, vector<16x32xf32> -> vector<16x32xf32>
    %89 = vector.broadcast %22 : vector<16x1xf32> to vector<16x32xf32>
    %90 = vector.broadcast %8 : vector<1x32xf32> to vector<16x32xf32>
    %91 = arith.mulf %89, %90 : vector<16x32xf32>
    %92 = arith.addf %88, %91 : vector<16x32xf32>
    %93 = arith.addf %92, %14 : vector<16x32xf32>
    %94 = vector.extract_strided_slice %85 {offsets = [0, 0], sizes = [16, 32], strides = [1, 1]} : vector<16x64xf32> to vector<16x32xf32>
    %95 = arith.truncf %94 : vector<16x32xf32> to vector<16x32xbf16>
    %cst_40 = arith.constant dense<0.000000e+00> : vector<16x32xf32>
    %96 = tpu.matmul %95, %7, %cst_40 {dimension_numbers = #tpu.dot_dimension_numbers<[1], [0], [0], [1], [0, 0, 1, 1], [], []>} : vector<16x32xbf16>, vector<32x32xbf16>, vector<16x32xf32> -> vector<16x32xf32>
    %97 = vector.broadcast %22 : vector<16x1xf32> to vector<16x32xf32>
    %98 = vector.broadcast %9 : vector<1x32xf32> to vector<16x32xf32>
    %99 = arith.mulf %97, %98 : vector<16x32xf32>
    %100 = arith.addf %96, %99 : vector<16x32xf32>
    %101 = arith.addf %100, %17 : vector<16x32xf32>
    %102 = vector.extract_strided_slice %84 {offsets = [0, 32], sizes = [16, 32], strides = [1, 1]} : vector<16x64xf32> to vector<16x32xf32>
    %103 = arith.truncf %102 : vector<16x32xf32> to vector<16x32xbf16>
    %cst_41 = arith.constant dense<0.000000e+00> : vector<16x32xf32>
    %104 = tpu.matmul %103, %6, %cst_41 {dimension_numbers = #tpu.dot_dimension_numbers<[1], [0], [0], [1], [0, 0, 1, 1], [], []>} : vector<16x32xbf16>, vector<32x32xbf16>, vector<16x32xf32> -> vector<16x32xf32>
    %105 = vector.broadcast %24 : vector<16x1xf32> to vector<16x32xf32>
    %106 = vector.broadcast %8 : vector<1x32xf32> to vector<16x32xf32>
    %107 = arith.mulf %105, %106 : vector<16x32xf32>
    %108 = arith.addf %104, %107 : vector<16x32xf32>
    %109 = arith.addf %108, %14 : vector<16x32xf32>
    %110 = vector.extract_strided_slice %85 {offsets = [0, 32], sizes = [16, 32], strides = [1, 1]} : vector<16x64xf32> to vector<16x32xf32>
    %111 = arith.truncf %110 : vector<16x32xf32> to vector<16x32xbf16>
    %cst_42 = arith.constant dense<0.000000e+00> : vector<16x32xf32>
    %112 = tpu.matmul %111, %7, %cst_42 {dimension_numbers = #tpu.dot_dimension_numbers<[1], [0], [0], [1], [0, 0, 1, 1], [], []>} : vector<16x32xbf16>, vector<32x32xbf16>, vector<16x32xf32> -> vector<16x32xf32>
    %113 = vector.broadcast %24 : vector<16x1xf32> to vector<16x32xf32>
    %114 = vector.broadcast %9 : vector<1x32xf32> to vector<16x32xf32>
    %115 = arith.mulf %113, %114 : vector<16x32xf32>
    %116 = arith.addf %112, %115 : vector<16x32xf32>
    %117 = arith.addf %116, %17 : vector<16x32xf32>
    %118 = tpu.concatenate %93, %109 in 1 : vector<16x32xf32>, vector<16x32xf32> -> vector<16x64xf32>
    %119 = tpu.concatenate %101, %117 in 1 : vector<16x32xf32>, vector<16x32xf32> -> vector<16x64xf32>
    %cst_43 = arith.constant -1.000000e+00 : f32
    %120 = vector.broadcast %cst_43 : f32 to vector<16x64xf32>
    %121 = arith.mulf %120, %119 : vector<16x64xf32>
    %122 = math.exp %121 : vector<16x64xf32>
    %123 = arith.mulf %118, %122 : vector<16x64xf32>
    %124 = arith.truncf %123 : vector<16x64xf32> to vector<16x64xbf16>
    %cst_44 = arith.constant dense<0.000000e+00> : vector<16x64xf32>
    %125 = tpu.matmul %0, %124, %cst_44 {dimension_numbers = #tpu.dot_dimension_numbers<[1], [0], [0], [1], [0, 0, 1, 1], [], []>} : vector<16x16xbf16>, vector<16x64xbf16>, vector<16x64xf32> -> vector<16x64xf32>
    %126 = arith.mulf %119, %122 : vector<16x64xf32>
    %127 = arith.mulf %126, %122 : vector<16x64xf32>
    %128 = arith.truncf %127 : vector<16x64xf32> to vector<16x64xbf16>
    %cst_45 = arith.constant dense<0.000000e+00> : vector<16x64xf32>
    %129 = tpu.matmul %1, %128, %cst_45 {dimension_numbers = #tpu.dot_dimension_numbers<[1], [0], [0], [1], [0, 0, 1, 1], [], []>} : vector<16x16xbf16>, vector<16x64xbf16>, vector<16x64xf32> -> vector<16x64xf32>
    %130 = math.tanh %125 : vector<16x64xf32>
    %cst_46 = arith.constant 0.000000e+00 : f32
    %131 = vector.broadcast %cst_46 : f32 to vector<16x64xf32>
    %132 = arith.maximumf %129, %131 : vector<16x64xf32>
    %133 = arith.mulf %73, %78 : vector<16x64xf32>
    %cst_47 = arith.constant 1.000000e+00 : f32
    %134 = vector.broadcast %cst_47 : f32 to vector<16x64xf32>
    %135 = arith.subf %134, %73 : vector<16x64xf32>
    %136 = arith.mulf %135, %130 : vector<16x64xf32>
    %137 = arith.addf %133, %136 : vector<16x64xf32>
    %138 = arith.mulf %73, %83 : vector<16x64xf32>
    %cst_48 = arith.constant 1.000000e+00 : f32
    %139 = vector.broadcast %cst_48 : f32 to vector<16x64xf32>
    %140 = arith.subf %139, %73 : vector<16x64xf32>
    %141 = arith.mulf %140, %132 : vector<16x64xf32>
    %142 = arith.addf %138, %141 : vector<16x64xf32>
    %143 = vector.extract_strided_slice %137 {offsets = [0, 0], sizes = [16, 32], strides = [1, 1]} : vector<16x64xf32> to vector<16x32xf32>
    %144 = vector.extract_strided_slice %142 {offsets = [0, 0], sizes = [16, 32], strides = [1, 1]} : vector<16x64xf32> to vector<16x32xf32>
    %145 = tpu.concatenate %143, %144 in 1 : vector<16x32xf32>, vector<16x32xf32> -> vector<16x64xf32>
    %c0_49 = arith.constant 0 : index
    %c0_50 = arith.constant 0 : index
    %c0_51 = arith.constant 0 : index
    %146 = vector.load %arg17[%c0_49, %c0_50, %c0_51] : memref<2x16x64xf32, #tpu.memory_space<vmem>>, vector<1x16x64xf32>
    %147 = vector.shape_cast %146 : vector<1x16x64xf32> to vector<16x64xf32>
    %148 = vector.shape_cast %145 : vector<16x64xf32> to vector<1x16x64xf32>
    tpu.vector_store %arg17[%c0_49, %c0_50, %c0_51], %148 {strides = array<i32>} : memref<2x16x64xf32, #tpu.memory_space<vmem>>, vector<1x16x64xf32>,
    %149 = vector.extract_strided_slice %137 {offsets = [0, 32], sizes = [16, 32], strides = [1, 1]} : vector<16x64xf32> to vector<16x32xf32>
    %150 = vector.extract_strided_slice %142 {offsets = [0, 32], sizes = [16, 32], strides = [1, 1]} : vector<16x64xf32> to vector<16x32xf32>
    %151 = tpu.concatenate %149, %150 in 1 : vector<16x32xf32>, vector<16x32xf32> -> vector<16x64xf32>
    %c1_52 = arith.constant 1 : index
    %c0_53 = arith.constant 0 : index
    %c0_54 = arith.constant 0 : index
    %152 = vector.load %arg17[%c1_52, %c0_53, %c0_54] : memref<2x16x64xf32, #tpu.memory_space<vmem>>, vector<1x16x64xf32>
    %153 = vector.shape_cast %152 : vector<1x16x64xf32> to vector<16x64xf32>
    %154 = vector.shape_cast %151 : vector<16x64xf32> to vector<1x16x64xf32>
    tpu.vector_store %arg17[%c1_52, %c0_53, %c0_54], %154 {strides = array<i32>} : memref<2x16x64xf32, #tpu.memory_space<vmem>>, vector<1x16x64xf32>,
    return
  }
  func.func @transform_0(%arg0: i32) -> (i32, i32, i32) {
    %c0_i32 = arith.constant 0 : i32
    %c0_i32_0 = arith.constant 0 : i32
    %c0_i32_1 = arith.constant 0 : i32
    return %arg0, %c0_i32, %c0_i32_0 : i32, i32, i32
  }
  func.func @transform_1(%arg0: i32) -> (i32, i32, i32) {
    %c0_i32 = arith.constant 0 : i32
    %c0_i32_0 = arith.constant 0 : i32
    %c0_i32_1 = arith.constant 0 : i32
    return %arg0, %c0_i32, %c0_i32_0 : i32, i32, i32
  }
  func.func @transform_2(%arg0: i32) -> (i32, i32) {
    %c0_i32 = arith.constant 0 : i32
    %c0_i32_0 = arith.constant 0 : i32
    %c0_i32_1 = arith.constant 0 : i32
    return %c0_i32, %c0_i32_0 : i32, i32
  }
  func.func @transform_3(%arg0: i32) -> (i32, i32) {
    %c0_i32 = arith.constant 0 : i32
    %c0_i32_0 = arith.constant 0 : i32
    %c0_i32_1 = arith.constant 0 : i32
    return %c0_i32, %c0_i32_0 : i32, i32
  }
  func.func @transform_4(%arg0: i32) -> (i32, i32) {
    %c0_i32 = arith.constant 0 : i32
    %c0_i32_0 = arith.constant 0 : i32
    %c0_i32_1 = arith.constant 0 : i32
    return %c0_i32, %c0_i32_0 : i32, i32
  }
  func.func @transform_5(%arg0: i32) -> (i32, i32) {
    %c0_i32 = arith.constant 0 : i32
    %c0_i32_0 = arith.constant 0 : i32
    %c0_i32_1 = arith.constant 0 : i32
    return %c0_i32, %c0_i32_0 : i32, i32
  }
  func.func @transform_6(%arg0: i32) -> (i32, i32) {
    %c0_i32 = arith.constant 0 : i32
    %c0_i32_0 = arith.constant 0 : i32
    %c0_i32_1 = arith.constant 0 : i32
    return %c0_i32, %c0_i32_0 : i32, i32
  }
  func.func @transform_7(%arg0: i32) -> (i32, i32) {
    %c0_i32 = arith.constant 0 : i32
    %c0_i32_0 = arith.constant 0 : i32
    %c0_i32_1 = arith.constant 0 : i32
    return %c0_i32, %c0_i32_0 : i32, i32
  }
  func.func @transform_8(%arg0: i32) -> (i32, i32) {
    %c0_i32 = arith.constant 0 : i32
    %c0_i32_0 = arith.constant 0 : i32
    %c0_i32_1 = arith.constant 0 : i32
    return %c0_i32, %c0_i32_0 : i32, i32
  }
  func.func @transform_9(%arg0: i32) -> (i32, i32) {
    %c0_i32 = arith.constant 0 : i32
    %c0_i32_0 = arith.constant 0 : i32
    %c0_i32_1 = arith.constant 0 : i32
    return %c0_i32, %c0_i32_0 : i32, i32
  }
  func.func @transform_10(%arg0: i32) -> (i32, i32) {
    %c0_i32 = arith.constant 0 : i32
    %c0_i32_0 = arith.constant 0 : i32
    %c0_i32_1 = arith.constant 0 : i32
    return %c0_i32, %c0_i32_0 : i32, i32
  }
  func.func @transform_11(%arg0: i32) -> (i32, i32) {
    %c0_i32 = arith.constant 0 : i32
    %c0_i32_0 = arith.constant 0 : i32
    %c0_i32_1 = arith.constant 0 : i32
    return %c0_i32, %c0_i32_0 : i32, i32
  }
  func.func @transform_12(%arg0: i32) -> (i32, i32) {
    %c0_i32 = arith.constant 0 : i32
    %c0_i32_0 = arith.constant 0 : i32
    %c0_i32_1 = arith.constant 0 : i32
    return %c0_i32, %c0_i32_0 : i32, i32
  }
  func.func @transform_13(%arg0: i32) -> (i32, i32) {
    %c0_i32 = arith.constant 0 : i32
    %c0_i32_0 = arith.constant 0 : i32
    %c0_i32_1 = arith.constant 0 : i32
    return %c0_i32, %c0_i32_0 : i32, i32
  }
  func.func @transform_14(%arg0: i32) -> (i32, i32) {
    %c0_i32 = arith.constant 0 : i32
    %c0_i32_0 = arith.constant 0 : i32
    %c0_i32_1 = arith.constant 0 : i32
    return %c0_i32, %c0_i32_0 : i32, i32
  }
  func.func @transform_15(%arg0: i32) -> (i32, i32) {
    %c0_i32 = arith.constant 0 : i32
    %c0_i32_0 = arith.constant 0 : i32
    %c0_i32_1 = arith.constant 0 : i32
    return %c0_i32, %c0_i32_0 : i32, i32
  }
  func.func @transform_16(%arg0: i32) -> (i32, i32, i32) {
    %c0_i32 = arith.constant 0 : i32
    %c0_i32_0 = arith.constant 0 : i32
    %c0_i32_1 = arith.constant 0 : i32
    return %arg0, %c0_i32, %c0_i32_0 : i32, i32, i32
  }
}

</mosaic_0001>

<llo_original>
// kernel: tpu_custom_call.1
$region0: #{tpu_custom_call.1}
  #allocation0 [shape = 'u32[]', space=smem, size = 0x4, offset = 0x4, fixed_abs, tag = 'smem constant byte address 0x4 - core index']
  #allocation1 [shape = 'u32[72,128]{1,0:T(1,128)}', space=vmem, size = 0x9000, scoped, tag = 'internal scratch']
  %s0 = inlined_call_operand.vmem [shape: f32[4,16,1], index: 0, kind: input, shape index: {}]
  %s1 = inlined_call_operand.vmem [shape: f32[4,16,64], index: 1, kind: input, shape index: {}]
  %s2 = inlined_call_operand.hbm [shape: bf16[16,16], index: 2, kind: input, shape index: {}]
  %s3 = inlined_call_operand.hbm [shape: bf16[16,16], index: 3, kind: input, shape index: {}]
  %s4 = inlined_call_operand.hbm [shape: bf16[32,32], index: 4, kind: input, shape index: {}]
  %s5 = inlined_call_operand.hbm [shape: bf16[32,32], index: 5, kind: input, shape index: {}]
  %s6 = inlined_call_operand.hbm [shape: f32[1,32], index: 6, kind: input, shape index: {}]
  %s7 = inlined_call_operand.hbm [shape: f32[1,32], index: 7, kind: input, shape index: {}]
  %s8 = inlined_call_operand.hbm [shape: f32[1,64], index: 8, kind: input, shape index: {}]
  %s9 = inlined_call_operand.hbm [shape: f32[1,64], index: 9, kind: input, shape index: {}]
  %s10 = inlined_call_operand.hbm [shape: bf16[32,32], index: 10, kind: input, shape index: {}]
  %s11 = inlined_call_operand.hbm [shape: f32[1,32], index: 11, kind: input, shape index: {}]
  %s12 = inlined_call_operand.hbm [shape: f32[1,32], index: 12, kind: input, shape index: {}]
  %s13 = inlined_call_operand.vmem [shape: bf16[32,32], index: 13, kind: input, shape index: {}]
  %s14 = inlined_call_operand.vmem [shape: f32[1,32], index: 14, kind: input, shape index: {}]
  %s15 = inlined_call_operand.vmem [shape: f32[1,32], index: 15, kind: input, shape index: {}]
  %s16 = inlined_call_operand.hbm [shape: f32[4,16,64], index: 16, kind: output, shape index: {}]
  %s17 = sld [smem:[#allocation0]]
  $region141: #{tpu_custom_call.1} parent=0
    _
  %s19 = ssub.s32 1, %s17
  %s20 = scalar_select 0, %s19, %s17
  $region1: #{tpu_custom_call.1} parent=0
    #allocation2 [shape = 'u8[4096]{0}', space=vmem, size = 0x1000, scoped, tag = 'input window, operand 2, single buffered']
    #allocation3 [shape = 's32[2]{0}', space=sflag, size = 0x8, scoped, tag = 'scoped memory for tpu_custom_call.1']
    #allocation4 [shape = 's32[2]{0}', space=sflag, size = 0x8, scoped, tag = 'scoped memory for tpu_custom_call.1']
    #allocation5 [shape = 'u8[4096]{0}', space=vmem, size = 0x1000, scoped, tag = 'input window, operand 3, single buffered']
    #allocation6 [shape = 's32[1]{0}', space=sflag, size = 0x4, scoped, tag = 'scoped memory for tpu_custom_call.1']
    #allocation7 [shape = 'u8[8192]{0}', space=vmem, size = 0x2000, scoped, tag = 'input window, operand 4, single buffered']
    #allocation8 [shape = 'u8[8192]{0}', space=vmem, size = 0x2000, scoped, tag = 'input window, operand 5, single buffered']
    #allocation9 [shape = 's32[1]{0}', space=sflag, size = 0x4, scoped, tag = 'scoped memory for tpu_custom_call.1']
    #allocation10 [shape = 'u8[512]{0}', space=vmem, size = 0x400, scoped, tag = 'input window, operand 6, single buffered']
    #allocation11 [shape = 'u8[512]{0}', space=vmem, size = 0x400, scoped, tag = 'input window, operand 7, single buffered']
    #allocation12 [shape = 's32[1]{0}', space=sflag, size = 0x4, scoped, tag = 'scoped memory for tpu_custom_call.1']
    #allocation13 [shape = 'u8[512]{0}', space=vmem, size = 0x400, scoped, tag = 'input window, operand 8, single buffered']
    #allocation14 [shape = 'u8[512]{0}', space=vmem, size = 0x400, scoped, tag = 'input window, operand 9, single buffered']
    #allocation15 [shape = 's32[1]{0}', space=sflag, size = 0x4, scoped, tag = 'scoped memory for tpu_custom_call.1']
    #allocation16 [shape = 'u8[8192]{0}', space=vmem, size = 0x2000, scoped, tag = 'input window, operand 10, single buffered']
    #allocation17 [shape = 'u8[512]{0}', space=vmem, size = 0x400, scoped, tag = 'input window, operand 11, single buffered']
    #allocation18 [shape = 's32[1]{0}', space=sflag, size = 0x4, scoped, tag = 'scoped memory for tpu_custom_call.1']
    #allocation19 [shape = 'u8[512]{0}', space=vmem, size = 0x400, scoped, tag = 'input window, operand 12, single buffered']
    #allocation20 [shape = 'u8[32768]{0}', space=vmem, size = 0x8000, scoped, tag = 'output window, operand 0']
    %21 = vsyncpa [#allocation3], 0
    %22 = vsyncpa [#allocation6], 0
    %23 = vsyncpa [#allocation9], 0
    %24 = vsyncpa [#allocation12], 0
    %25 = vsyncpa [#allocation15], 0
    %26 = vsyncpa [#allocation18], 0
    %27 = vsyncpa [#allocation4], 0
    %s28 = scalar_lea.sflag [#allocation4], 1
    %29 = vsyncpa %s28, 0
    loop: start=0, step=1, limit=4
    $region2: #{tpu_custom_call.1} parent=1 // loop_pre_header
      _
    $region3: #{tpu_custom_call.1} parent=1 // loop_header
      %s31 = sphi 0, %s35
      %p32 = scmp.ge.s32.totalorder %s31, 4
      %s41 = sphi 0, %s43
      %s44 = sphi 0, %s41
      %s45 = sphi 0, %s44
      %s61 = sphi 0, %s45
      %s67 = sphi 0, %s69
      %s70 = sphi 0, %s67
      %s71 = sphi 0, %s70
      %s87 = sphi 0, %s71
      %s91 = sphi 0, %s91
      %s93 = sphi 0, %s91
      %s94 = sphi 0, %s93
      %s108 = sphi 0, %s94
      %s112 = sphi 0, %s112
      %s114 = sphi 0, %s112
      %s115 = sphi 0, %s114
      %s129 = sphi 0, %s115
      %s133 = sphi 0, %s133
      %s135 = sphi 0, %s133
      %s136 = sphi 0, %s135
      %s150 = sphi 0, %s136
      %s154 = sphi 0, %s154
      %s156 = sphi 0, %s154
      %s157 = sphi 0, %s156
      %s171 = sphi 0, %s157
      %s175 = sphi 0, %s175
      %s177 = sphi 0, %s175
      %s178 = sphi 0, %s177
      %s192 = sphi 0, %s178
      %s196 = sphi 0, %s196
      %s198 = sphi 0, %s196
      %s199 = sphi 0, %s198
      %s213 = sphi 0, %s199
      %s217 = sphi 0, %s217
      %s219 = sphi 0, %s217
      %s220 = sphi 0, %s219
      %s234 = sphi 0, %s220
      %s238 = sphi 0, %s238
      %s240 = sphi 0, %s238
      %s241 = sphi 0, %s240
      %s255 = sphi 0, %s241
      %s259 = sphi 0, %s259
      %s261 = sphi 0, %s259
      %s262 = sphi 0, %s261
      %s276 = sphi 0, %s262
      %s280 = sphi 0, %s280
      %s282 = sphi 0, %s280
      %s283 = sphi 0, %s282
      %s297 = sphi 0, %s283
      %s301 = sphi 0, %s301
      %s303 = sphi 0, %s301
      %s304 = sphi 0, %s303
      %s318 = sphi 0, %s304
      %s322 = sphi 0, %s322
      %s324 = sphi 0, %s322
      %s325 = sphi 0, %s324
      %s339 = sphi 0, %s325
      %s343 = sphi 0, %s343
      %s345 = sphi 0, %s343
      %s346 = sphi 0, %s345
      %s360 = sphi 0, %s346
      %s364 = sphi 0, %s364
      %s366 = sphi 0, %s364
      %s367 = sphi 0, %s366
      %s381 = sphi 0, %s367
      %s387 = sphi 0, %s389
      %s390 = sphi 0, %s387
      %s391 = sphi 0, %s390
      %s407 = sphi 0, %s391
    $region4: #{tpu_custom_call.1} parent=1 // loop_header_branch
      %34 = sbr.rel (%p32) target = $region8
    $region5: #{tpu_custom_call.1} parent=1 // loop_body
      %s36 = ssub.s32 %s31, 1
      %s37 = ssub.s32 %s31, 2
      %s38 = sadd.s32 %s31, 1
      %s39 = ssub.s32 %s31, %s38
      %p40 = scmp.eq.s32.totalorder %s39, 0
      %s42 = sadd.s32 %s41, 1
      %s43 = scalar_select %p40, %s41, %s42
      %p46 = pneg %p40
      %p47 = scmp.eq.s32.totalorder %s31, 1
      %p48 = por %p46, %p47
      %p49 = scmp.ne.s32.totalorder %s41, %s44
      %p50 = scmp.eq.s32.totalorder %s31, 0
      %p51 = por %p49, %p50
      %p52 = scmp.ne.s32.totalorder %s41, %s44
      %p53 = scmp.eq.s32.totalorder %s36, 1
      %p54 = por %p52, %p53
      %p55 = scmp.ne.s32.totalorder %s44, %s45
      %p56 = scmp.eq.s32.totalorder %s36, 0
      %p57 = por %p55, %p56
      %p58 = scmp.ne.s32.totalorder %s44, %s45
      %p59 = scmp.eq.s32.totalorder %s37, 1
      %p60 = por %p58, %p59
      %p62 = scmp.ne.s32.totalorder %s45, %s61
      %p63 = scmp.eq.s32.totalorder %s37, 0
      %p64 = por %p62, %p63
      %s65 = ssub.s32 %s31, %s38
      %p66 = scmp.eq.s32.totalorder %s65, 0
      %s68 = sadd.s32 %s67, 1
      %s69 = scalar_select %p66, %s67, %s68
      %p72 = pneg %p66
      %p73 = scmp.eq.s32.totalorder %s31, 1
      %p74 = por %p72, %p73
      %p75 = scmp.ne.s32.totalorder %s67, %s70
      %p76 = scmp.eq.s32.totalorder %s31, 0
      %p77 = por %p75, %p76
      %p78 = scmp.ne.s32.totalorder %s67, %s70
      %p79 = scmp.eq.s32.totalorder %s36, 1
      %p80 = por %p78, %p79
      %p81 = scmp.ne.s32.totalorder %s70, %s71
      %p82 = scmp.eq.s32.totalorder %s36, 0
      %p83 = por %p81, %p82
      %p84 = scmp.ne.s32.totalorder %s70, %s71
      %p85 = scmp.eq.s32.totalorder %s37, 1
      %p86 = por %p84, %p85
      %p88 = scmp.ne.s32.totalorder %s71, %s87
      %p89 = scmp.eq.s32.totalorder %s37, 0
      %p90 = por %p88, %p89
      %s92 = sadd.s32 %s91, 1
      %p95 = scmp.eq.s32.totalorder %s31, 1
      %p96 = scmp.ne.s32.totalorder %s91, %s93
      %p97 = scmp.eq.s32.totalorder %s31, 0
      %p98 = por %p96, %p97
      %p99 = scmp.ne.s32.totalorder %s91, %s93
      %p100 = scmp.eq.s32.totalorder %s36, 1
      %p101 = por %p99, %p100
      %p102 = scmp.ne.s32.totalorder %s93, %s94
      %p103 = scmp.eq.s32.totalorder %s36, 0
      %p104 = por %p102, %p103
      %p105 = scmp.ne.s32.totalorder %s93, %s94
      %p106 = scmp.eq.s32.totalorder %s37, 1
      %p107 = por %p105, %p106
      %p109 = scmp.ne.s32.totalorder %s94, %s108
      %p110 = scmp.eq.s32.totalorder %s37, 0
      %p111 = por %p109, %p110
      %s113 = sadd.s32 %s112, 1
      %p116 = scmp.eq.s32.totalorder %s31, 1
      %p117 = scmp.ne.s32.totalorder %s112, %s114
      %p118 = scmp.eq.s32.totalorder %s31, 0
      %p119 = por %p117, %p118
      %p120 = scmp.ne.s32.totalorder %s112, %s114
      %p121 = scmp.eq.s32.totalorder %s36, 1
      %p122 = por %p120, %p121
      %p123 = scmp.ne.s32.totalorder %s114, %s115
      %p124 = scmp.eq.s32.totalorder %s36, 0
      %p125 = por %p123, %p124
      %p126 = scmp.ne.s32.totalorder %s114, %s115
      %p127 = scmp.eq.s32.totalorder %s37, 1
      %p128 = por %p126, %p127
      %p130 = scmp.ne.s32.totalorder %s115, %s129
      %p131 = scmp.eq.s32.totalorder %s37, 0
      %p132 = por %p130, %p131
      %s134 = sadd.s32 %s133, 1
      %p137 = scmp.eq.s32.totalorder %s31, 1
      %p138 = scmp.ne.s32.totalorder %s133, %s135
      %p139 = scmp.eq.s32.totalorder %s31, 0
      %p140 = por %p138, %p139
      %p141 = scmp.ne.s32.totalorder %s133, %s135
      %p142 = scmp.eq.s32.totalorder %s36, 1
      %p143 = por %p141, %p142
      %p144 = scmp.ne.s32.totalorder %s135, %s136
      %p145 = scmp.eq.s32.totalorder %s36, 0
      %p146 = por %p144, %p145
      %p147 = scmp.ne.s32.totalorder %s135, %s136
      %p148 = scmp.eq.s32.totalorder %s37, 1
      %p149 = por %p147, %p148
      %p151 = scmp.ne.s32.totalorder %s136, %s150
      %p152 = scmp.eq.s32.totalorder %s37, 0
      %p153 = por %p151, %p152
      %s155 = sadd.s32 %s154, 1
      %p158 = scmp.eq.s32.totalorder %s31, 1
      %p159 = scmp.ne.s32.totalorder %s154, %s156
      %p160 = scmp.eq.s32.totalorder %s31, 0
      %p161 = por %p159, %p160
      %p162 = scmp.ne.s32.totalorder %s154, %s156
      %p163 = scmp.eq.s32.totalorder %s36, 1
      %p164 = por %p162, %p163
      %p165 = scmp.ne.s32.totalorder %s156, %s157
      %p166 = scmp.eq.s32.totalorder %s36, 0
      %p167 = por %p165, %p166
      %p168 = scmp.ne.s32.totalorder %s156, %s157
      %p169 = scmp.eq.s32.totalorder %s37, 1
      %p170 = por %p168, %p169
      %p172 = scmp.ne.s32.totalorder %s157, %s171
      %p173 = scmp.eq.s32.totalorder %s37, 0
      %p174 = por %p172, %p173
      %s176 = sadd.s32 %s175, 1
      %p179 = scmp.eq.s32.totalorder %s31, 1
      %p180 = scmp.ne.s32.totalorder %s175, %s177
      %p181 = scmp.eq.s32.totalorder %s31, 0
      %p182 = por %p180, %p181
      %p183 = scmp.ne.s32.totalorder %s175, %s177
      %p184 = scmp.eq.s32.totalorder %s36, 1
      %p185 = por %p183, %p184
      %p186 = scmp.ne.s32.totalorder %s177, %s178
      %p187 = scmp.eq.s32.totalorder %s36, 0
      %p188 = por %p186, %p187
      %p189 = scmp.ne.s32.totalorder %s177, %s178
      %p190 = scmp.eq.s32.totalorder %s37, 1
      %p191 = por %p189, %p190
      %p193 = scmp.ne.s32.totalorder %s178, %s192
      %p194 = scmp.eq.s32.totalorder %s37, 0
      %p195 = por %p193, %p194
      %s197 = sadd.s32 %s196, 1
      %p200 = scmp.eq.s32.totalorder %s31, 1
      %p201 = scmp.ne.s32.totalorder %s196, %s198
      %p202 = scmp.eq.s32.totalorder %s31, 0
      %p203 = por %p201, %p202
      %p204 = scmp.ne.s32.totalorder %s196, %s198
      %p205 = scmp.eq.s32.totalorder %s36, 1
      %p206 = por %p204, %p205
      %p207 = scmp.ne.s32.totalorder %s198, %s199
      %p208 = scmp.eq.s32.totalorder %s36, 0
      %p209 = por %p207, %p208
      %p210 = scmp.ne.s32.totalorder %s198, %s199
      %p211 = scmp.eq.s32.totalorder %s37, 1
      %p212 = por %p210, %p211
      %p214 = scmp.ne.s32.totalorder %s199, %s213
      %p215 = scmp.eq.s32.totalorder %s37, 0
      %p216 = por %p214, %p215
      %s218 = sadd.s32 %s217, 1
      %p221 = scmp.eq.s32.totalorder %s31, 1
      %p222 = scmp.ne.s32.totalorder %s217, %s219
      %p223 = scmp.eq.s32.totalorder %s31, 0
      %p224 = por %p222, %p223
      %p225 = scmp.ne.s32.totalorder %s217, %s219
      %p226 = scmp.eq.s32.totalorder %s36, 1
      %p227 = por %p225, %p226
      %p228 = scmp.ne.s32.totalorder %s219, %s220
      %p229 = scmp.eq.s32.totalorder %s36, 0
      %p230 = por %p228, %p229
      %p231 = scmp.ne.s32.totalorder %s219, %s220
      %p232 = scmp.eq.s32.totalorder %s37, 1
      %p233 = por %p231, %p232
      %p235 = scmp.ne.s32.totalorder %s220, %s234
      %p236 = scmp.eq.s32.totalorder %s37, 0
      %p237 = por %p235, %p236
      %s239 = sadd.s32 %s238, 1
      %p242 = scmp.eq.s32.totalorder %s31, 1
      %p243 = scmp.ne.s32.totalorder %s238, %s240
      %p244 = scmp.eq.s32.totalorder %s31, 0
      %p245 = por %p243, %p244
      %p246 = scmp.ne.s32.totalorder %s238, %s240
      %p247 = scmp.eq.s32.totalorder %s36, 1
      %p248 = por %p246, %p247
      %p249 = scmp.ne.s32.totalorder %s240, %s241
      %p250 = scmp.eq.s32.totalorder %s36, 0
      %p251 = por %p249, %p250
      %p252 = scmp.ne.s32.totalorder %s240, %s241
      %p253 = scmp.eq.s32.totalorder %s37, 1
      %p254 = por %p252, %p253
      %p256 = scmp.ne.s32.totalorder %s241, %s255
      %p257 = scmp.eq.s32.totalorder %s37, 0
      %p258 = por %p256, %p257
      %s260 = sadd.s32 %s259, 1
      %p263 = scmp.eq.s32.totalorder %s31, 1
      %p264 = scmp.ne.s32.totalorder %s259, %s261
      %p265 = scmp.eq.s32.totalorder %s31, 0
      %p266 = por %p264, %p265
      %p267 = scmp.ne.s32.totalorder %s259, %s261
      %p268 = scmp.eq.s32.totalorder %s36, 1
      %p269 = por %p267, %p268
      %p270 = scmp.ne.s32.totalorder %s261, %s262
      %p271 = scmp.eq.s32.totalorder %s36, 0
      %p272 = por %p270, %p271
      %p273 = scmp.ne.s32.totalorder %s261, %s262
      %p274 = scmp.eq.s32.totalorder %s37, 1
      %p275 = por %p273, %p274
      %p277 = scmp.ne.s32.totalorder %s262, %s276
      %p278 = scmp.eq.s32.totalorder %s37, 0
      %p279 = por %p277, %p278
      %s281 = sadd.s32 %s280, 1
      %p284 = scmp.eq.s32.totalorder %s31, 1
      %p285 = scmp.ne.s32.totalorder %s280, %s282
      %p286 = scmp.eq.s32.totalorder %s31, 0
      %p287 = por %p285, %p286
      %p288 = scmp.ne.s32.totalorder %s280, %s282
      %p289 = scmp.eq.s32.totalorder %s36, 1
      %p290 = por %p288, %p289
      %p291 = scmp.ne.s32.totalorder %s282, %s283
      %p292 = scmp.eq.s32.totalorder %s36, 0
      %p293 = por %p291, %p292
      %p294 = scmp.ne.s32.totalorder %s282, %s283
      %p295 = scmp.eq.s32.totalorder %s37, 1
      %p296 = por %p294, %p295
      %p298 = scmp.ne.s32.totalorder %s283, %s297
      %p299 = scmp.eq.s32.totalorder %s37, 0
      %p300 = por %p298, %p299
      %s302 = sadd.s32 %s301, 1
      %p305 = scmp.eq.s32.totalorder %s31, 1
      %p306 = scmp.ne.s32.totalorder %s301, %s303
      %p307 = scmp.eq.s32.totalorder %s31, 0
      %p308 = por %p306, %p307
      %p309 = scmp.ne.s32.totalorder %s301, %s303
      %p310 = scmp.eq.s32.totalorder %s36, 1
      %p311 = por %p309, %p310
      %p312 = scmp.ne.s32.totalorder %s303, %s304
      %p313 = scmp.eq.s32.totalorder %s36, 0
      %p314 = por %p312, %p313
      %p315 = scmp.ne.s32.totalorder %s303, %s304
      %p316 = scmp.eq.s32.totalorder %s37, 1
      %p317 = por %p315, %p316
      %p319 = scmp.ne.s32.totalorder %s304, %s318
      %p320 = scmp.eq.s32.totalorder %s37, 0
      %p321 = por %p319, %p320
      %s323 = sadd.s32 %s322, 1
      %p326 = scmp.eq.s32.totalorder %s31, 1
      %p327 = scmp.ne.s32.totalorder %s322, %s324
      %p328 = scmp.eq.s32.totalorder %s31, 0
      %p329 = por %p327, %p328
      %p330 = scmp.ne.s32.totalorder %s322, %s324
      %p331 = scmp.eq.s32.totalorder %s36, 1
      %p332 = por %p330, %p331
      %p333 = scmp.ne.s32.totalorder %s324, %s325
      %p334 = scmp.eq.s32.totalorder %s36, 0
      %p335 = por %p333, %p334
      %p336 = scmp.ne.s32.totalorder %s324, %s325
      %p337 = scmp.eq.s32.totalorder %s37, 1
      %p338 = por %p336, %p337
      %p340 = scmp.ne.s32.totalorder %s325, %s339
      %p341 = scmp.eq.s32.totalorder %s37, 0
      %p342 = por %p340, %p341
      %s344 = sadd.s32 %s343, 1
      %p347 = scmp.eq.s32.totalorder %s31, 1
      %p348 = scmp.ne.s32.totalorder %s343, %s345
      %p349 = scmp.eq.s32.totalorder %s31, 0
      %p350 = por %p348, %p349
      %p351 = scmp.ne.s32.totalorder %s343, %s345
      %p352 = scmp.eq.s32.totalorder %s36, 1
      %p353 = por %p351, %p352
      %p354 = scmp.ne.s32.totalorder %s345, %s346
      %p355 = scmp.eq.s32.totalorder %s36, 0
      %p356 = por %p354, %p355
      %p357 = scmp.ne.s32.totalorder %s345, %s346
      %p358 = scmp.eq.s32.totalorder %s37, 1
      %p359 = por %p357, %p358
      %p361 = scmp.ne.s32.totalorder %s346, %s360
      %p362 = scmp.eq.s32.totalorder %s37, 0
      %p363 = por %p361, %p362
      %s365 = sadd.s32 %s364, 1
      %p368 = scmp.eq.s32.totalorder %s31, 1
      %p369 = scmp.ne.s32.totalorder %s364, %s366
      %p370 = scmp.eq.s32.totalorder %s31, 0
      %p371 = por %p369, %p370
      %p372 = scmp.ne.s32.totalorder %s364, %s366
      %p373 = scmp.eq.s32.totalorder %s36, 1
      %p374 = por %p372, %p373
      %p375 = scmp.ne.s32.totalorder %s366, %s367
      %p376 = scmp.eq.s32.totalorder %s36, 0
      %p377 = por %p375, %p376
      %p378 = scmp.ne.s32.totalorder %s366, %s367
      %p379 = scmp.eq.s32.totalorder %s37, 1
      %p380 = por %p378, %p379
      %p382 = scmp.ne.s32.totalorder %s367, %s381
      %p383 = scmp.eq.s32.totalorder %s37, 0
      %p384 = por %p382, %p383
      %s385 = ssub.s32 %s31, %s38
      %p386 = scmp.eq.s32.totalorder %s385, 0
      %s388 = sadd.s32 %s387, 1
      %s389 = scalar_select %p386, %s387, %s388
      %p392 = pneg %p386
      %p393 = scmp.eq.s32.totalorder %s31, 1
      %p394 = por %p392, %p393
      %p395 = scmp.ne.s32.totalorder %s387, %s390
      %p396 = scmp.eq.s32.totalorder %s31, 0
      %p397 = por %p395, %p396
      %p398 = scmp.ne.s32.totalorder %s387, %s390
      %p399 = scmp.eq.s32.totalorder %s36, 1
      %p400 = por %p398, %p399
      %p401 = scmp.ne.s32.totalorder %s390, %s391
      %p402 = scmp.eq.s32.totalorder %s36, 0
      %p403 = por %p401, %p402
      %p404 = scmp.ne.s32.totalorder %s390, %s391
      %p405 = scmp.eq.s32.totalorder %s37, 1
      %p406 = por %p404, %p405
      %p408 = scmp.ne.s32.totalorder %s391, %s407
      %p409 = scmp.eq.s32.totalorder %s37, 0
      %p410 = por %p408, %p409
      %p411 = scmp.le.s32.totalorder 1, %s31
      %p412 = scmp.lt.s32.totalorder %s31, 3
      %p413 = pnand %p411, %p412
      %p414 = pneg %p413
      // Predicated region
      $region9: #{tpu_custom_call.1} parent=5 // pred_check
        _
      $region10: #{tpu_custom_call.1} parent=5 // pred_check_branch
        %416 = sbr.rel (%p413) target = $region12
      $region11: #{tpu_custom_call.1} parent=5 // pred_region
        %s417 = ssub.s32 %s31, 1
        // Predicated region
        $region13: #{tpu_custom_call.1} parent=11 // pred_check
          %p418 = pneg %p104
        $region14: #{tpu_custom_call.1} parent=11 // pred_check_branch
          %420 = sbr.rel (%p418) target = $region16
        $region15: #{tpu_custom_call.1} parent=11 // pred_region
          %422 = vsyncadd [#allocation3], 0
          %s423 = sshll.u32 %s2, 4
          %s424 = int_to_ptr.hbm [resolvable:$true] %s423
          %s425 = sshll.u32 [#allocation2], 4
          %s426 = int_to_ptr.vmem [resolvable:$true] %s425
          %431 = dma.hbm_to_vmem [thread:$0]  %s424, 128, %s426, [#allocation3], 64, 64, 4
        $region16: #{tpu_custom_call.1} parent=11 // pred_fallthru
          _
        // Predicated region
        $region17: #{tpu_custom_call.1} parent=11 // pred_check
          %p432 = pneg %p125
        $region18: #{tpu_custom_call.1} parent=11 // pred_check_branch
          %434 = sbr.rel (%p432) target = $region20
        $region19: #{tpu_custom_call.1} parent=11 // pred_region
          %436 = vsyncadd [#allocation6], 0
          %s437 = sshll.u32 %s3, 4
          %s438 = int_to_ptr.hbm [resolvable:$true] %s437
          %s439 = sshll.u32 [#allocation5], 4
          %s440 = int_to_ptr.vmem [resolvable:$true] %s439
          %445 = dma.hbm_to_vmem [thread:$0]  %s438, 128, %s440, [#allocation6], 64, 64, 4
        $region20: #{tpu_custom_call.1} parent=11 // pred_fallthru
          _
        // Predicated region
        $region21: #{tpu_custom_call.1} parent=11 // pred_check
          %p446 = pneg %p146
        $region22: #{tpu_custom_call.1} parent=11 // pred_check_branch
          %448 = sbr.rel (%p446) target = $region24
        $region23: #{tpu_custom_call.1} parent=11 // pred_region
          %450 = vsyncadd [#allocation6], 0
          %s451 = sshll.u32 %s4, 4
          %s452 = int_to_ptr.hbm [resolvable:$true] %s451
          %s453 = sshll.u32 [#allocation7], 4
          %s454 = int_to_ptr.vmem [resolvable:$true] %s453
          %459 = dma.hbm_to_vmem [thread:$0]  %s452, 256, %s454, [#allocation6], 64, 64, 4
        $region24: #{tpu_custom_call.1} parent=11 // pred_fallthru
          _
        // Predicated region
        $region25: #{tpu_custom_call.1} parent=11 // pred_check
          %p460 = pneg %p167
        $region26: #{tpu_custom_call.1} parent=11 // pred_check_branch
          %462 = sbr.rel (%p460) target = $region28
        $region27: #{tpu_custom_call.1} parent=11 // pred_region
          %464 = vsyncadd [#allocation9], 0
          %s465 = sshll.u32 %s5, 4
          %s466 = int_to_ptr.hbm [resolvable:$true] %s465
          %s467 = sshll.u32 [#allocation8], 4
          %s468 = int_to_ptr.vmem [resolvable:$true] %s467
          %473 = dma.hbm_to_vmem [thread:$0]  %s466, 256, %s468, [#allocation9], 64, 64, 4
        $region28: #{tpu_custom_call.1} parent=11 // pred_fallthru
          _
        // Predicated region
        $region29: #{tpu_custom_call.1} parent=11 // pred_check
          %p474 = pneg %p188
        $region30: #{tpu_custom_call.1} parent=11 // pred_check_branch
          %476 = sbr.rel (%p474) target = $region32
        $region31: #{tpu_custom_call.1} parent=11 // pred_region
          %478 = vsyncadd [#allocation9], 0
          %s480 = sshll.u32 %s6, 4
          %s481 = int_to_ptr.hbm [resolvable:$true] %s480
          %s482 = sshll.u32 [#allocation10], 4
          %s483 = int_to_ptr.vmem [resolvable:$true] %s482
          %485 = dma.hbm_to_vmem [thread:$0]  %s481, 16, %s483, [#allocation9]
        $region32: #{tpu_custom_call.1} parent=11 // pred_fallthru
          _
        // Predicated region
        $region33: #{tpu_custom_call.1} parent=11 // pred_check
          %p486 = pneg %p209
        $region34: #{tpu_custom_call.1} parent=11 // pred_check_branch
          %488 = sbr.rel (%p486) target = $region36
        $region35: #{tpu_custom_call.1} parent=11 // pred_region
          %490 = vsyncadd [#allocation12], 0
          %s492 = sshll.u32 %s7, 4
          %s493 = int_to_ptr.hbm [resolvable:$true] %s492
          %s494 = sshll.u32 [#allocation11], 4
          %s495 = int_to_ptr.vmem [resolvable:$true] %s494
          %497 = dma.hbm_to_vmem [thread:$0]  %s493, 16, %s495, [#allocation12]
        $region36: #{tpu_custom_call.1} parent=11 // pred_fallthru
          _
        // Predicated region
        $region37: #{tpu_custom_call.1} parent=11 // pred_check
          %p498 = pneg %p230
        $region38: #{tpu_custom_call.1} parent=11 // pred_check_branch
          %500 = sbr.rel (%p498) target = $region40
        $region39: #{tpu_custom_call.1} parent=11 // pred_region
          %502 = vsyncadd [#allocation12], 0
          %s504 = sshll.u32 %s8, 4
          %s505 = int_to_ptr.hbm [resolvable:$true] %s504
          %s506 = sshll.u32 [#allocation13], 4
          %s507 = int_to_ptr.vmem [resolvable:$true] %s506
          %509 = dma.hbm_to_vmem [thread:$0]  %s505, 16, %s507, [#allocation12]
        $region40: #{tpu_custom_call.1} parent=11 // pred_fallthru
          _
        // Predicated region
        $region41: #{tpu_custom_call.1} parent=11 // pred_check
          %p510 = pneg %p251
        $region42: #{tpu_custom_call.1} parent=11 // pred_check_branch
          %512 = sbr.rel (%p510) target = $region44
        $region43: #{tpu_custom_call.1} parent=11 // pred_region
          %514 = vsyncadd [#allocation15], 0
          %s516 = sshll.u32 %s9, 4
          %s517 = int_to_ptr.hbm [resolvable:$true] %s516
          %s518 = sshll.u32 [#allocation14], 4
          %s519 = int_to_ptr.vmem [resolvable:$true] %s518
          %521 = dma.hbm_to_vmem [thread:$0]  %s517, 16, %s519, [#allocation15]
        $region44: #{tpu_custom_call.1} parent=11 // pred_fallthru
          _
        // Predicated region
        $region45: #{tpu_custom_call.1} parent=11 // pred_check
          %p522 = pneg %p272
        $region46: #{tpu_custom_call.1} parent=11 // pred_check_branch
          %524 = sbr.rel (%p522) target = $region48
        $region47: #{tpu_custom_call.1} parent=11 // pred_region
          %526 = vsyncadd [#allocation15], 0
          %s527 = sshll.u32 %s10, 4
          %s528 = int_to_ptr.hbm [resolvable:$true] %s527
          %s529 = sshll.u32 [#allocation16], 4
          %s530 = int_to_ptr.vmem [resolvable:$true] %s529
          %535 = dma.hbm_to_vmem [thread:$0]  %s528, 256, %s530, [#allocation15], 64, 64, 4
        $region48: #{tpu_custom_call.1} parent=11 // pred_fallthru
          _
        // Predicated region
        $region49: #{tpu_custom_call.1} parent=11 // pred_check
          %p536 = pneg %p293
        $region50: #{tpu_custom_call.1} parent=11 // pred_check_branch
          %538 = sbr.rel (%p536) target = $region52
        $region51: #{tpu_custom_call.1} parent=11 // pred_region
          %540 = vsyncadd [#allocation18], 0
          %s542 = sshll.u32 %s11, 4
          %s543 = int_to_ptr.hbm [resolvable:$true] %s542
          %s544 = sshll.u32 [#allocation17], 4
          %s545 = int_to_ptr.vmem [resolvable:$true] %s544
          %547 = dma.hbm_to_vmem [thread:$0]  %s543, 16, %s545, [#allocation18]
        $region52: #{tpu_custom_call.1} parent=11 // pred_fallthru
          _
        // Predicated region
        $region53: #{tpu_custom_call.1} parent=11 // pred_check
          %p548 = pneg %p314
        $region54: #{tpu_custom_call.1} parent=11 // pred_check_branch
          %550 = sbr.rel (%p548) target = $region56
        $region55: #{tpu_custom_call.1} parent=11 // pred_region
          %552 = vsyncadd [#allocation18], 0
          %s554 = sshll.u32 %s12, 4
          %s555 = int_to_ptr.hbm [resolvable:$true] %s554
          %s556 = sshll.u32 [#allocation19], 4
          %s557 = int_to_ptr.vmem [resolvable:$true] %s556
          %559 = dma.hbm_to_vmem [thread:$0]  %s555, 16, %s557, [#allocation18]
        $region56: #{tpu_custom_call.1} parent=11 // pred_fallthru
          _
        // Predicated region
        $region57: #{tpu_custom_call.1} parent=11 // pred_check
          %p560 = pneg %p335
        $region58: #{tpu_custom_call.1} parent=11 // pred_check_branch
          %562 = sbr.rel (%p560) target = $region60
        $region59: #{tpu_custom_call.1} parent=11 // pred_region
          _
        $region60: #{tpu_custom_call.1} parent=11 // pred_fallthru
          _
        // Predicated region
        $region61: #{tpu_custom_call.1} parent=11 // pred_check
          %p563 = pneg %p356
        $region62: #{tpu_custom_call.1} parent=11 // pred_check_branch
          %565 = sbr.rel (%p563) target = $region64
        $region63: #{tpu_custom_call.1} parent=11 // pred_region
          _
        $region64: #{tpu_custom_call.1} parent=11 // pred_fallthru
          _
        // Predicated region
        $region65: #{tpu_custom_call.1} parent=11 // pred_check
          %p566 = pneg %p377
        $region66: #{tpu_custom_call.1} parent=11 // pred_check_branch
          %568 = sbr.rel (%p566) target = $region68
        $region67: #{tpu_custom_call.1} parent=11 // pred_region
          _
        $region68: #{tpu_custom_call.1} parent=11 // pred_fallthru
          _
      $region12: #{tpu_custom_call.1} parent=5 // pred_fallthru
        _
      %p569 = scmp.lt.s32.totalorder %s31, 2
      // Predicated region
      $region69: #{tpu_custom_call.1} parent=5 // pred_check
        %p570 = pneg %p569
      $region70: #{tpu_custom_call.1} parent=5 // pred_check_branch
        %572 = sbr.rel (%p570) target = $region72
      $region71: #{tpu_custom_call.1} parent=5 // pred_region
        // Predicated region
        $region73: #{tpu_custom_call.1} parent=71 // pred_check
          %p573 = pneg %p51
        $region74: #{tpu_custom_call.1} parent=71 // pred_check_branch
          %575 = sbr.rel (%p573) target = $region76
        $region75: #{tpu_custom_call.1} parent=71 // pred_region
          %s576 = smul.u32 2, %s31
          %p577 = scmp.lt.s32.totalorder %s576, 3
          %s578 = scalar_select %p577, %s576, 3
          %s579 = smul.addr %s578, 2
          %s580 = smul.addr %s579, 8
          %s581 = scalar_lea.vmem %s0, %s580
          %s582 = smul.u32 2, %s31
        $region76: #{tpu_custom_call.1} parent=71 // pred_fallthru
          _
        // Predicated region
        $region77: #{tpu_custom_call.1} parent=71 // pred_check
          %p583 = pneg %p77
        $region78: #{tpu_custom_call.1} parent=71 // pred_check_branch
          %585 = sbr.rel (%p583) target = $region80
        $region79: #{tpu_custom_call.1} parent=71 // pred_region
          %s586 = smul.u32 2, %s31
          %p587 = scmp.lt.s32.totalorder %s586, 3
          %s588 = scalar_select %p587, %s586, 3
          %s589 = smul.addr %s588, 2
          %s590 = smul.addr %s589, 8
          %s591 = scalar_lea.vmem %s1, %s590
          %s592 = smul.u32 2, %s31
        $region80: #{tpu_custom_call.1} parent=71 // pred_fallthru
          _
      $region72: #{tpu_custom_call.1} parent=5 // pred_fallthru
        _
      %p593 = scmp.le.s32.totalorder 1, %s31
      %p594 = scmp.lt.s32.totalorder %s31, 3
      %p595 = pnand %p593, %p594
      %p596 = pneg %p595
      // Predicated region
      $region81: #{tpu_custom_call.1} parent=5 // pred_check
        _
      $region82: #{tpu_custom_call.1} parent=5 // pred_check_branch
        %598 = sbr.rel (%p595) target = $region84
      $region83: #{tpu_custom_call.1} parent=5 // pred_region
        %s599 = ssub.s32 %s31, 1
        // Predicated region
        $region85: #{tpu_custom_call.1} parent=83 // pred_check
          %p600 = pneg %p104
        $region86: #{tpu_custom_call.1} parent=83 // pred_check_branch
          %602 = sbr.rel (%p600) target = $region88
        $region87: #{tpu_custom_call.1} parent=83 // pred_region
          %604 = dma.done [#allocation3], 128
        $region88: #{tpu_custom_call.1} parent=83 // pred_fallthru
          _
        // Predicated region
        $region89: #{tpu_custom_call.1} parent=83 // pred_check
          %p605 = pneg %p125
        $region90: #{tpu_custom_call.1} parent=83 // pred_check_branch
          %607 = sbr.rel (%p605) target = $region92
        $region91: #{tpu_custom_call.1} parent=83 // pred_region
          %609 = dma.done [#allocation6], 128
        $region92: #{tpu_custom_call.1} parent=83 // pred_fallthru
          _
        // Predicated region
        $region93: #{tpu_custom_call.1} parent=83 // pred_check
          %p610 = pneg %p146
        $region94: #{tpu_custom_call.1} parent=83 // pred_check_branch
          %612 = sbr.rel (%p610) target = $region96
        $region95: #{tpu_custom_call.1} parent=83 // pred_region
          %614 = dma.done [#allocation6], 256
        $region96: #{tpu_custom_call.1} parent=83 // pred_fallthru
          _
        // Predicated region
        $region97: #{tpu_custom_call.1} parent=83 // pred_check
          %p615 = pneg %p167
        $region98: #{tpu_custom_call.1} parent=83 // pred_check_branch
          %617 = sbr.rel (%p615) target = $region100
        $region99: #{tpu_custom_call.1} parent=83 // pred_region
          %619 = dma.done [#allocation9], 256
        $region100: #{tpu_custom_call.1} parent=83 // pred_fallthru
          _
        // Predicated region
        $region101: #{tpu_custom_call.1} parent=83 // pred_check
          %p620 = pneg %p188
        $region102: #{tpu_custom_call.1} parent=83 // pred_check_branch
          %622 = sbr.rel (%p620) target = $region104
        $region103: #{tpu_custom_call.1} parent=83 // pred_region
          %624 = dma.done [#allocation9], 16
        $region104: #{tpu_custom_call.1} parent=83 // pred_fallthru
          _
        // Predicated region
        $region105: #{tpu_custom_call.1} parent=83 // pred_check
          %p625 = pneg %p209
        $region106: #{tpu_custom_call.1} parent=83 // pred_check_branch
          %627 = sbr.rel (%p625) target = $region108
        $region107: #{tpu_custom_call.1} parent=83 // pred_region
          %629 = dma.done [#allocation12], 16
        $region108: #{tpu_custom_call.1} parent=83 // pred_fallthru
          _
        // Predicated region
        $region109: #{tpu_custom_call.1} parent=83 // pred_check
          %p630 = pneg %p230
        $region110: #{tpu_custom_call.1} parent=83 // pred_check_branch
          %632 = sbr.rel (%p630) target = $region112
        $region111: #{tpu_custom_call.1} parent=83 // pred_region
          %634 = dma.done [#allocation12], 16
        $region112: #{tpu_custom_call.1} parent=83 // pred_fallthru
          _
        // Predicated region
        $region113: #{tpu_custom_call.1} parent=83 // pred_check
          %p635 = pneg %p251
        $region114: #{tpu_custom_call.1} parent=83 // pred_check_branch
          %637 = sbr.rel (%p635) target = $region116
        $region115: #{tpu_custom_call.1} parent=83 // pred_region
          %639 = dma.done [#allocation15], 16
        $region116: #{tpu_custom_call.1} parent=83 // pred_fallthru
          _
        // Predicated region
        $region117: #{tpu_custom_call.1} parent=83 // pred_check
          %p640 = pneg %p272
        $region118: #{tpu_custom_call.1} parent=83 // pred_check_branch
          %642 = sbr.rel (%p640) target = $region120
        $region119: #{tpu_custom_call.1} parent=83 // pred_region
          %644 = dma.done [#allocation15], 256
        $region120: #{tpu_custom_call.1} parent=83 // pred_fallthru
          _
        // Predicated region
        $region121: #{tpu_custom_call.1} parent=83 // pred_check
          %p645 = pneg %p293
        $region122: #{tpu_custom_call.1} parent=83 // pred_check_branch
          %647 = sbr.rel (%p645) target = $region124
        $region123: #{tpu_custom_call.1} parent=83 // pred_region
          %649 = dma.done [#allocation18], 16
        $region124: #{tpu_custom_call.1} parent=83 // pred_fallthru
          _
        // Predicated region
        $region125: #{tpu_custom_call.1} parent=83 // pred_check
          %p650 = pneg %p314
        $region126: #{tpu_custom_call.1} parent=83 // pred_check_branch
          %652 = sbr.rel (%p650) target = $region128
        $region127: #{tpu_custom_call.1} parent=83 // pred_region
          %654 = dma.done [#allocation18], 16
        $region128: #{tpu_custom_call.1} parent=83 // pred_fallthru
          _
        %s655 = smul.u32 2, %s36
        %p656 = scmp.lt.s32.totalorder %s655, 3
        %s657 = scalar_select %p656, %s655, 3
        %s658 = smul.addr %s657, 2
        %s659 = smul.addr %s658, 8
        %s660 = scalar_lea.vmem %s0, %s659
        %p661 = pneg %p57
        %p662 = pneg %p54
        %s663 = smul.u32 2, %s36
        %p664 = scmp.lt.s32.totalorder %s663, 3
        %s665 = scalar_select %p664, %s663, 3
        %s666 = smul.addr %s665, 2
        %s667 = smul.addr %s666, 8
        %s668 = scalar_lea.vmem %s1, %s667
        %p669 = pneg %p83
        %p670 = pneg %p80
        %p671 = pneg %p104
        %p672 = pneg %p101
        %p673 = pneg %p125
        %p674 = pneg %p122
        %p675 = pneg %p146
        %p676 = pneg %p143
        %p677 = pneg %p167
        %p678 = pneg %p164
        %p679 = pneg %p188
        %p680 = pneg %p185
        %p681 = pneg %p209
        %p682 = pneg %p206
        %p683 = pneg %p230
        %p684 = pneg %p227
        %p685 = pneg %p251
        %p686 = pneg %p248
        %p687 = pneg %p272
        %p688 = pneg %p269
        %p689 = pneg %p293
        %p690 = pneg %p290
        %p691 = pneg %p314
        %p692 = pneg %p311
        %p693 = pneg %p335
        %p694 = pneg %p332
        %p695 = pneg %p356
        %p696 = pneg %p353
        %p697 = pneg %p377
        %p698 = pneg %p374
        %p699 = pneg %p403
        %p700 = pneg %p400
        %s701 = sand.u32 %s390, 1
        %s702 = scalar_lea.sflag [#allocation4], %s701
        %s703 = sand.u32 %s390, 1
        %s704 = smul.addr %s703, 32
        %s705 = scalar_lea.vmem [#allocation20], %s704
        %s706 = smul.u32 2, %s36
        %p707 = scmp.lt.s32.totalorder %s706, 3
        %s708 = scalar_select %p707, %s706, 3
        %s709 = smul.addr %s708, 2
        %s710 = smul.addr %s709, 8
        %s711 = scalar_lea.vmem %s0, %s710
        %s712 = smul.u32 2, %s36
        %s713 = smul.u32 2, %s36
        %p714 = scmp.lt.s32.totalorder %s713, 3
        %s715 = scalar_select %p714, %s713, 3
        %s716 = smul.addr %s715, 2
        %s717 = smul.addr %s716, 8
        %s718 = scalar_lea.vmem %s1, %s717
        %s719 = smul.u32 2, %s36
        %s720 = smul.u32 2, %s36
        %v722 = vld [vmem:[#allocation2] sm:$0xf]
        %v723 = vld [vmem:[#allocation2 + $0x4] sm:$0xf]
        %v724 = vld [vmem:[#allocation5] sm:$0xf]
        %v725 = vld [vmem:[#allocation5 + $0x4] sm:$0xf]
        %v726 = vld [vmem:[#allocation7] sm:$0xf]
        %v727 = vld [vmem:[#allocation7 + $0x4] sm:$0xf]
        %v728 = vld [vmem:[#allocation7 + $0x8] sm:$0xf]
        %v729 = vld [vmem:[#allocation7 + $0xc] sm:$0xf]
        %v730 = vld [vmem:[#allocation8] sm:$0xf]
        %v731 = vld [vmem:[#allocation8 + $0x4] sm:$0xf]
        %v732 = vld [vmem:[#allocation8 + $0x8] sm:$0xf]
        %v733 = vld [vmem:[#allocation8 + $0xc] sm:$0xf]
        %v734 = vld [vmem:[#allocation10] sm:$0x1]
        %v735 = vld [vmem:[#allocation11] sm:$0x1]
        %v736 = vld [vmem:[#allocation16] sm:$0xf]
        %v737 = vld [vmem:[#allocation16 + $0x4] sm:$0xf]
        %v738 = vld [vmem:[#allocation16 + $0x8] sm:$0xf]
        %v739 = vld [vmem:[#allocation16 + $0xc] sm:$0xf]
        %v740 = vld [vmem:[%s13] sm:$0xf]
        %v741 = vld [vmem:[%s13 + $0x4] sm:$0xf]
        %v742 = vld [vmem:[%s13 + $0x8] sm:$0xf]
        %v743 = vld [vmem:[%s13 + $0xc] sm:$0xf]
        %v744 = vld [vmem:[#allocation17] sm:$0x1]
        %v745 = vld [vmem:[%s14] sm:$0x1]
        %v746 = vld [vmem:[#allocation13] sm:$0x1]
        %v747 = vld [vmem:[#allocation14] sm:$0x1]
        %v748 = vld [vmem:[#allocation19] sm:$0x1]
        %v750 = vperm.slane %v748, 0
        %v752 = vld [vmem:[%s15] sm:$0x1]
        %v754 = vperm.slane %v752, 0
        %v756 = vld [vmem:[%s718] sm:$0xff]
        %v757 = vld [vmem:[%s718 + $0x8] sm:$0xff]
        %v758 = vld [vmem:[%s718 + $0x10] sm:$0xff]
        %v759 = vld [vmem:[%s718 + $0x18] sm:$0xff]
        %v760 = vld [vmem:[%s711] sm:$0xff]
        %v761 = vld [vmem:[%s711 + $0x8] sm:$0xff]
        %s762 = scalar_lea.vmem %s711, 16
        %v763 = vld [vmem:[%s762] sm:$0xff]
        %v764 = vld [vmem:[%s762 + $0x8] sm:$0xff]
        %v765 = vpack.c.bf16 %v757, %v756
        %v766 = vpack.c.bf16 %v759, %v758
        %v771 = vunpack.c.l.b16 %v726
        %v772 = vunpack.c.l.b16 %v727
        %v773 = vunpack.c.l.b16 %v728
        %v774 = vunpack.c.l.b16 %v729
        %v775 = vpack.c.b16 %v772, %v771
        %v776 = vpack.c.b16 %v774, %v773
        %vm779 = vcmask 261120
        %v781 = vsel %vm779, %v765, 0
        %v784 = vsel %vm779, %v766, 0
        %786 = vmatpush.bf16.msra.mxu0 0
        %787 = vmatpush.bf16.msra.mxu0 0
        %788 = vmatpush.bf16.msra.mxu0 0
        %789 = vmatpush.bf16.msra.mxu0 0
        %790 = vmatpush.bf16.msra.mxu0 0
        %791 = vmatpush.bf16.msra.mxu0 0
        %792 = vmatpush.bf16.msra.mxu0 %v776
        %793 = vmatpush.bf16.msra.mxu0 %v775
        %794 = vmatmul.bf16.gmra.mxu0 %v781
        %v795 = vpop.f32.mrf.mxu0
        %v796 = vadd.f32 0.0, %v795
        %v797 = vpop.f32.mrf.mxu0
        %v798 = vadd.f32 0.0, %v797
        %799 = vmatmul.bf16.gmra.mxu0 %v784
        %v800 = vpop.f32.mrf.mxu0
        %v801 = vadd.f32 0.0, %v800
        %v802 = vpop.f32.mrf.mxu0
        %v803 = vadd.f32 0.0, %v802
        %804 = vdwg.mxu0
        %v809 = vunpack.c.l.b16 %v730
        %v810 = vunpack.c.l.b16 %v731
        %v811 = vunpack.c.l.b16 %v732
        %v812 = vunpack.c.l.b16 %v733
        %v813 = vpack.c.b16 %v810, %v809
        %v814 = vpack.c.b16 %v812, %v811
        %817 = vmatpush.bf16.msra.mxu0 0
        %818 = vmatpush.bf16.msra.mxu0 0
        %819 = vmatpush.bf16.msra.mxu0 0
        %820 = vmatpush.bf16.msra.mxu0 0
        %821 = vmatpush.bf16.msra.mxu0 0
        %822 = vmatpush.bf16.msra.mxu0 0
        %823 = vmatpush.bf16.msra.mxu0 %v814
        %824 = vmatpush.bf16.msra.mxu0 %v813
        %825 = vmatmul.bf16.gmra.mxu0 %v781
        %v826 = vpop.f32.mrf.mxu0
        %v827 = vadd.f32 0.0, %v826
        %v828 = vpop.f32.mrf.mxu0
        %v829 = vadd.f32 0.0, %v828
        %830 = vmatmul.bf16.gmra.mxu0 %v784
        %v831 = vpop.f32.mrf.mxu0
        %v832 = vadd.f32 0.0, %v831
        %v833 = vpop.f32.mrf.mxu0
        %v834 = vadd.f32 0.0, %v833
        %835 = vdwg.mxu0
        %837 = vset.pattern.permute.xlu0 0
        %838 = vperm.xlu0 %837, %v760
        %v839 = vpop.permute.xlu0 %838
        %842 = vset.pattern.permute.xlu0 0
        %843 = vperm.xlu0 %842, %v761
        %v844 = vpop.permute.xlu0 %843
        %v847 = vperm.slane %v734, 0
        %v849 = vmul.f32 %v839, %v847
        %v850 = vmul.f32 %v844, %v847
        %v851 = vadd.f32 %v796, %v849
        %v852 = vadd.f32 %v798, %v850
        %854 = vset.pattern.permute.xlu0 0
        %855 = vperm.xlu0 %854, %v763
        %v856 = vpop.permute.xlu0 %855
        %859 = vset.pattern.permute.xlu0 0
        %860 = vperm.xlu0 %859, %v764
        %v861 = vpop.permute.xlu0 %860
        %v863 = vmul.f32 %v856, %v847
        %v864 = vmul.f32 %v861, %v847
        %v865 = vadd.f32 %v801, %v863
        %v866 = vadd.f32 %v803, %v864
        %v868 = vperm.slane %v735, 0
        %v870 = vmul.f32 %v839, %v868
        %v871 = vmul.f32 %v844, %v868
        %v872 = vadd.f32 %v827, %v870
        %v873 = vadd.f32 %v829, %v871
        %v874 = vmul.f32 %v856, %v868
        %v875 = vmul.f32 %v861, %v868
        %v876 = vadd.f32 %v832, %v874
        %v877 = vadd.f32 %v834, %v875
        %880 = vrot.lane.b32.xlu0 %v865, 32
        %v881 = vpop.permute.xlu0 %880
        %882 = vrot.lane.b32.xlu0 %v866, 32
        %v883 = vpop.permute.xlu0 %882
        %888 = vrot.lane.b32.xlu0 %v872, 64
        %v889 = vpop.permute.xlu0 %888
        %890 = vrot.lane.b32.xlu0 %v873, 64
        %v891 = vpop.permute.xlu0 %890
        %896 = vrot.lane.b32.xlu0 %v876, 96
        %v897 = vpop.permute.xlu0 %896
        %898 = vrot.lane.b32.xlu0 %v877, 96
        %v899 = vpop.permute.xlu0 %898
        %v902 = vsel %vm779, %v851, %v881
        %v903 = vsel %vm779, %v852, %v883
        %vm904 = vcmask 523264
        %v905 = vsel %vm904, %v902, %v889
        %v906 = vsel %vm904, %v903, %v891
        %vm907 = vcmask 785408
        %v908 = vsel %vm907, %v905, %v897
        %v909 = vsel %vm907, %v906, %v899
        %v910 = vpack.c.bf16 %v909, %v908
        %v913 = vunpack.c.l.b16 %v722
        %v914 = vunpack.c.l.b16 %v723
        %v915 = vpack.c.b16 %v914, %v913
        %vm916 = vcmask 130048
        %v918 = vsel %vm916, %v915, 0
        %920 = vmatpush.bf16.msra.mxu0 0
        %921 = vmatpush.bf16.msra.mxu0 0
        %922 = vmatpush.bf16.msra.mxu0 0
        %923 = vmatpush.bf16.msra.mxu0 0
        %924 = vmatpush.bf16.msra.mxu0 0
        %925 = vmatpush.bf16.msra.mxu0 0
        %926 = vmatpush.bf16.msra.mxu0 0
        %927 = vmatpush.bf16.msra.mxu0 %v910
        %928 = vmatmul.bf16.gmra.mxu0 %v918
        %v929 = vpop.f32.mrf.mxu0
        %v930 = vadd.f32 0.0, %v929
        %v931 = vpop.f32.mrf.mxu0
        %v932 = vadd.f32 0.0, %v931
        %933 = vdwg.mxu0
        %v935 = vperm.slane %v746, 0
        %v937 = vadd.f32 %v930, %v935
        %v938 = vadd.f32 %v932, %v935
        %v939 = vxor.u32 %v937, 2147483648
        %v940 = vxor.u32 %v938, 2147483648
        %v941 = vmul.f32 %v939, 1.442695
        %v942 = vpow.pop %v941
        %v943 = vmul.f32 %v940, 1.442695
        %v944 = vpow.pop %v943
        %v945 = vadd.f32 %v942, 1.0
        %v946 = vadd.f32 %v944, 1.0
        %v947 = vrcp.pop %v945
        %v948 = vmul.f32 %v945, %v947
        %v949 = vsub.f32 1.0, %v948
        %v950 = vmul.f32 %v947, %v949
        %v951 = vadd.f32 %v947, %v950
        %vm952 = vweird.f32 %v945
        %vm953 = vweird.f32 %v947
        %vm954 = vmor %vm952, %vm953
        %v955 = vsel %vm954, %v947, %v951
        %v956 = vand.u32 2147483647, %v945
        %vm957 = vcmp.eq.f32.partialorder %v956, 8.507059e+37
        %v958 = vand.u32 %v945, 2147483648
        %v959 = vor.u32 1.1754944e-38, %v958
        %v960 = vsel %vm957, %v959, %v955
        %v961 = vmul.f32 1.0, %v960
        %v962 = vrcp.pop %v946
        %v963 = vmul.f32 %v946, %v962
        %v964 = vsub.f32 1.0, %v963
        %v965 = vmul.f32 %v962, %v964
        %v966 = vadd.f32 %v962, %v965
        %vm967 = vweird.f32 %v946
        %vm968 = vweird.f32 %v962
        %vm969 = vmor %vm967, %vm968
        %v970 = vsel %vm969, %v962, %v966
        %v971 = vand.u32 2147483647, %v946
        %vm972 = vcmp.eq.f32.partialorder %v971, 8.507059e+37
        %v973 = vand.u32 %v946, 2147483648
        %v974 = vor.u32 1.1754944e-38, %v973
        %v975 = vsel %vm972, %v974, %v970
        %v976 = vmul.f32 1.0, %v975
        %v978 = vperm.slane %v747, 0
        %979 = vrot.lane.b32.xlu0 %v978, 64
        %v980 = vpop.permute.xlu0 %979
        %v982 = vadd.f32 %v930, %v980
        %v983 = vadd.f32 %v932, %v980
        %v984 = vxor.u32 %v982, 2147483648
        %v985 = vxor.u32 %v983, 2147483648
        %v986 = vmul.f32 %v984, 1.442695
        %v987 = vpow.pop %v986
        %v988 = vmul.f32 %v985, 1.442695
        %v989 = vpow.pop %v988
        %v990 = vadd.f32 %v987, 1.0
        %v991 = vadd.f32 %v989, 1.0
        %v992 = vrcp.pop %v990
        %v993 = vmul.f32 %v990, %v992
        %v994 = vsub.f32 1.0, %v993
        %v995 = vmul.f32 %v992, %v994
        %v996 = vadd.f32 %v992, %v995
        %vm997 = vweird.f32 %v990
        %vm998 = vweird.f32 %v992
        %vm999 = vmor %vm997, %vm998
        %v1000 = vsel %vm999, %v992, %v996
        %v1001 = vand.u32 2147483647, %v990
        %vm1002 = vcmp.eq.f32.partialorder %v1001, 8.507059e+37
        %v1003 = vand.u32 %v990, 2147483648
        %v1004 = vor.u32 1.1754944e-38, %v1003
        %v1005 = vsel %vm1002, %v1004, %v1000
        %v1006 = vmul.f32 1.0, %v1005
        %v1007 = vrcp.pop %v991
        %v1008 = vmul.f32 %v991, %v1007
        %v1009 = vsub.f32 1.0, %v1008
        %v1010 = vmul.f32 %v1007, %v1009
        %v1011 = vadd.f32 %v1007, %v1010
        %vm1012 = vweird.f32 %v991
        %vm1013 = vweird.f32 %v1007
        %vm1014 = vmor %vm1012, %vm1013
        %v1015 = vsel %vm1014, %v1007, %v1011
        %v1016 = vand.u32 2147483647, %v991
        %vm1017 = vcmp.eq.f32.partialorder %v1016, 8.507059e+37
        %v1018 = vand.u32 %v991, 2147483648
        %v1019 = vor.u32 1.1754944e-38, %v1018
        %v1020 = vsel %vm1017, %v1019, %v1015
        %v1021 = vmul.f32 1.0, %v1020
        %1024 = vrot.lane.b32.xlu0 %v758, 32
        %v1025 = vpop.permute.xlu0 %1024
        %1026 = vrot.lane.b32.xlu0 %v759, 32
        %v1027 = vpop.permute.xlu0 %1026
        %v1030 = vsel %vm779, %v756, %v1025
        %v1031 = vsel %vm779, %v757, %v1027
        %1034 = vrot.lane.b32.xlu0 %v756, 96
        %v1035 = vpop.permute.xlu0 %1034
        %1036 = vrot.lane.b32.xlu0 %v757, 96
        %v1037 = vpop.permute.xlu0 %1036
        %v1040 = vsel %vm779, %v1035, %v758
        %v1041 = vsel %vm779, %v1037, %v759
        %v1042 = vmul.f32 %v961, %v1030
        %v1043 = vmul.f32 %v976, %v1031
        %v1044 = vmul.f32 %v961, %v1040
        %v1045 = vmul.f32 %v976, %v1041
        %v1046 = vpack.c.bf16 %v1043, %v1042
        %v1048 = vperm.slane %v744, 0
        %v1050 = vmul.f32 %v839, %v1048
        %v1051 = vmul.f32 %v844, %v1048
        %v1056 = vunpack.c.l.b16 %v736
        %v1057 = vunpack.c.l.b16 %v737
        %v1058 = vunpack.c.l.b16 %v738
        %v1059 = vunpack.c.l.b16 %v739
        %v1060 = vpack.c.b16 %v1057, %v1056
        %v1061 = vpack.c.b16 %v1059, %v1058
        %v1065 = vsel %vm779, %v1046, 0
        %1067 = vmatpush.bf16.msra.mxu0 0
        %1068 = vmatpush.bf16.msra.mxu0 0
        %1069 = vmatpush.bf16.msra.mxu0 0
        %1070 = vmatpush.bf16.msra.mxu0 0
        %1071 = vmatpush.bf16.msra.mxu0 0
        %1072 = vmatpush.bf16.msra.mxu0 0
        %1073 = vmatpush.bf16.msra.mxu0 %v1061
        %1074 = vmatpush.bf16.msra.mxu0 %v1060
        %1075 = vmatmul.bf16.gmra.mxu0 %v1065
        %v1076 = vpop.f32.mrf.mxu0
        %v1077 = vadd.f32 %v1050, %v1076
        %v1078 = vpop.f32.mrf.mxu0
        %v1079 = vadd.f32 %v1051, %v1078
        %1080 = vdwg.mxu0
        %v1081 = vadd.f32 %v1077, %v750
        %v1082 = vadd.f32 %v1079, %v750
        %v1083 = vpack.c.bf16 %v1045, %v1044
        %v1085 = vperm.slane %v745, 0
        %v1087 = vmul.f32 %v839, %v1085
        %v1088 = vmul.f32 %v844, %v1085
        %v1093 = vunpack.c.l.b16 %v740
        %v1094 = vunpack.c.l.b16 %v741
        %v1095 = vunpack.c.l.b16 %v742
        %v1096 = vunpack.c.l.b16 %v743
        %v1097 = vpack.c.b16 %v1094, %v1093
        %v1098 = vpack.c.b16 %v1096, %v1095
        %v1102 = vsel %vm779, %v1083, 0
        %1104 = vmatpush.bf16.msra.mxu0 0
        %1105 = vmatpush.bf16.msra.mxu0 0
        %1106 = vmatpush.bf16.msra.mxu0 0
        %1107 = vmatpush.bf16.msra.mxu0 0
        %1108 = vmatpush.bf16.msra.mxu0 0
        %1109 = vmatpush.bf16.msra.mxu0 0
        %1110 = vmatpush.bf16.msra.mxu0 %v1098
        %1111 = vmatpush.bf16.msra.mxu0 %v1097
        %1112 = vmatmul.bf16.gmra.mxu0 %v1102
        %v1113 = vpop.f32.mrf.mxu0
        %v1114 = vadd.f32 %v1087, %v1113
        %v1115 = vpop.f32.mrf.mxu0
        %v1116 = vadd.f32 %v1088, %v1115
        %1117 = vdwg.mxu0
        %v1118 = vadd.f32 %v1114, %v754
        %v1119 = vadd.f32 %v1116, %v754
        %v1120 = vmul.f32 %v856, %v1048
        %v1121 = vmul.f32 %v861, %v1048
        %1123 = vrot.lane.b32.xlu0 %v1046, 96
        %v1124 = vpop.permute.xlu0 %1123
        %v1126 = vsel %vm779, %v1124, 0
        %1128 = vmatpush.bf16.msra.mxu0 0
        %1129 = vmatpush.bf16.msra.mxu0 0
        %1130 = vmatpush.bf16.msra.mxu0 0
        %1131 = vmatpush.bf16.msra.mxu0 0
        %1132 = vmatpush.bf16.msra.mxu0 0
        %1133 = vmatpush.bf16.msra.mxu0 0
        %1134 = vmatpush.bf16.msra.mxu0 %v1061
        %1135 = vmatpush.bf16.msra.mxu0 %v1060
        %1136 = vmatmul.bf16.gmra.mxu0 %v1126
        %v1137 = vpop.f32.mrf.mxu0
        %v1138 = vadd.f32 %v1120, %v1137
        %v1139 = vpop.f32.mrf.mxu0
        %v1140 = vadd.f32 %v1121, %v1139
        %1141 = vdwg.mxu0
        %v1142 = vadd.f32 %v1138, %v750
        %v1143 = vadd.f32 %v1140, %v750
        %v1144 = vmul.f32 %v856, %v1085
        %v1145 = vmul.f32 %v861, %v1085
        %1147 = vrot.lane.b32.xlu0 %v1083, 96
        %v1148 = vpop.permute.xlu0 %1147
        %v1150 = vsel %vm779, %v1148, 0
        %1152 = vmatpush.bf16.msra.mxu0 0
        %1153 = vmatpush.bf16.msra.mxu0 0
        %1154 = vmatpush.bf16.msra.mxu0 0
        %1155 = vmatpush.bf16.msra.mxu0 0
        %1156 = vmatpush.bf16.msra.mxu0 0
        %1157 = vmatpush.bf16.msra.mxu0 0
        %1158 = vmatpush.bf16.msra.mxu0 %v1098
        %1159 = vmatpush.bf16.msra.mxu0 %v1097
        %1160 = vmatmul.bf16.gmra.mxu0 %v1150
        %v1161 = vpop.f32.mrf.mxu0
        %v1162 = vadd.f32 %v1144, %v1161
        %v1163 = vpop.f32.mrf.mxu0
        %v1164 = vadd.f32 %v1145, %v1163
        %1165 = vdwg.mxu0
        %v1166 = vadd.f32 %v1162, %v754
        %v1167 = vadd.f32 %v1164, %v754
        %1170 = vrot.lane.b32.xlu0 %v1142, 32
        %v1171 = vpop.permute.xlu0 %1170
        %1172 = vrot.lane.b32.xlu0 %v1143, 32
        %v1173 = vpop.permute.xlu0 %1172
        %v1176 = vsel %vm779, %v1081, %v1171
        %v1177 = vsel %vm779, %v1082, %v1173
        %1180 = vrot.lane.b32.xlu0 %v1166, 32
        %v1181 = vpop.permute.xlu0 %1180
        %1182 = vrot.lane.b32.xlu0 %v1167, 32
        %v1183 = vpop.permute.xlu0 %1182
        %v1186 = vsel %vm779, %v1118, %v1181
        %v1187 = vsel %vm779, %v1119, %v1183
        %v1188 = vmul.f32 %v1186, -1.0
        %v1189 = vmul.f32 %v1187, -1.0
        %v1190 = vmul.f32 %v1188, 1.442695
        %v1191 = vpow.pop %v1190
        %v1192 = vmul.f32 %v1189, 1.442695
        %v1193 = vpow.pop %v1192
        %v1194 = vmul.f32 %v1176, %v1191
        %v1195 = vmul.f32 %v1177, %v1193
        %v1196 = vpack.c.bf16 %v1195, %v1194
        %1197 = vmatpush.bf16.msra.mxu0 0
        %1198 = vmatpush.bf16.msra.mxu0 0
        %1199 = vmatpush.bf16.msra.mxu0 0
        %1200 = vmatpush.bf16.msra.mxu0 0
        %1201 = vmatpush.bf16.msra.mxu0 0
        %1202 = vmatpush.bf16.msra.mxu0 0
        %1203 = vmatpush.bf16.msra.mxu0 0
        %1204 = vmatpush.bf16.msra.mxu0 %v1196
        %1205 = vmatmul.bf16.gmra.mxu0 %v918
        %v1206 = vpop.f32.mrf.mxu0
        %v1207 = vadd.f32 0.0, %v1206
        %v1208 = vpop.f32.mrf.mxu0
        %v1209 = vadd.f32 0.0, %v1208
        %1210 = vdwg.mxu0
        %v1211 = vmul.f32 %v1186, %v1191
        %v1212 = vmul.f32 %v1187, %v1193
        %v1213 = vmul.f32 %v1211, %v1191
        %v1214 = vmul.f32 %v1212, %v1193
        %v1215 = vpack.c.bf16 %v1214, %v1213
        %v1218 = vunpack.c.l.b16 %v724
        %v1219 = vunpack.c.l.b16 %v725
        %v1220 = vpack.c.b16 %v1219, %v1218
        %v1222 = vsel %vm916, %v1220, 0
        %1224 = vmatpush.bf16.msra.mxu0 0
        %1225 = vmatpush.bf16.msra.mxu0 0
        %1226 = vmatpush.bf16.msra.mxu0 0
        %1227 = vmatpush.bf16.msra.mxu0 0
        %1228 = vmatpush.bf16.msra.mxu0 0
        %1229 = vmatpush.bf16.msra.mxu0 0
        %1230 = vmatpush.bf16.msra.mxu0 0
        %1231 = vmatpush.bf16.msra.mxu0 %v1215
        %1232 = vmatmul.bf16.gmra.mxu0 %v1222
        %v1233 = vpop.f32.mrf.mxu0
        %v1234 = vadd.f32 0.0, %v1233
        %v1235 = vpop.f32.mrf.mxu0
        %v1236 = vadd.f32 0.0, %v1235
        %1237 = vdwg.mxu0
        %v1238 = vtanh.pop %v1207
        %v1239 = vtanh.pop %v1209
        %v1240 = vmax.f32 %v1234, 0.0
        %v1241 = vmax.f32 %v1236, 0.0
        %1244 = vrot.lane.b32.xlu0 %v1030, 64
        %v1245 = vpop.permute.xlu0 %1244
        %1246 = vrot.lane.b32.xlu0 %v1031, 64
        %v1247 = vpop.permute.xlu0 %1246
        %v1250 = vmul.f32 %v1006, %v1245
        %v1251 = vmul.f32 %v1021, %v1247
        %v1252 = vsub.f32 1.0, %v1006
        %v1253 = vsub.f32 1.0, %v1021
        %1256 = vrot.lane.b32.xlu0 %v1238, 64
        %v1257 = vpop.permute.xlu0 %1256
        %1258 = vrot.lane.b32.xlu0 %v1239, 64
        %v1259 = vpop.permute.xlu0 %1258
        %v1262 = vmul.f32 %v1252, %v1257
        %v1263 = vmul.f32 %v1253, %v1259
        %v1264 = vadd.f32 %v1250, %v1262
        %v1265 = vadd.f32 %v1251, %v1263
        %1268 = vrot.lane.b32.xlu0 %v1040, 64
        %v1269 = vpop.permute.xlu0 %1268
        %1270 = vrot.lane.b32.xlu0 %v1041, 64
        %v1271 = vpop.permute.xlu0 %1270
        %v1274 = vmul.f32 %v1006, %v1269
        %v1275 = vmul.f32 %v1021, %v1271
        %1278 = vrot.lane.b32.xlu0 %v1240, 64
        %v1279 = vpop.permute.xlu0 %1278
        %1280 = vrot.lane.b32.xlu0 %v1241, 64
        %v1281 = vpop.permute.xlu0 %1280
        %v1284 = vmul.f32 %v1252, %v1279
        %v1285 = vmul.f32 %v1253, %v1281
        %v1286 = vadd.f32 %v1274, %v1284
        %v1287 = vadd.f32 %v1275, %v1285
        %1290 = vrot.lane.b32.xlu0 %v1264, 64
        %v1291 = vpop.permute.xlu0 %1290
        %1292 = vrot.lane.b32.xlu0 %v1265, 64
        %v1293 = vpop.permute.xlu0 %1292
        %1298 = vrot.lane.b32.xlu0 %v1286, 96
        %v1299 = vpop.permute.xlu0 %1298
        %1300 = vrot.lane.b32.xlu0 %v1287, 96
        %v1301 = vpop.permute.xlu0 %1300
        %v1304 = vsel %vm779, %v1291, %v1299
        %v1305 = vsel %vm779, %v1293, %v1301
        %1306 = vst.msk [vmem:[%s705] sm:$0xff] %vm904, %v1304
        %1307 = vst.msk [vmem:[%s705 + $0x8] sm:$0xff] %vm904, %v1305
        %1308 = vrot.lane.b32.xlu0 %v1264, 32
        %v1309 = vpop.permute.xlu0 %1308
        %1310 = vrot.lane.b32.xlu0 %v1265, 32
        %v1311 = vpop.permute.xlu0 %1310
        %1314 = vrot.lane.b32.xlu0 %v1286, 64
        %v1315 = vpop.permute.xlu0 %1314
        %1316 = vrot.lane.b32.xlu0 %v1287, 64
        %v1317 = vpop.permute.xlu0 %1316
        %v1320 = vsel %vm779, %v1309, %v1315
        %v1321 = vsel %vm779, %v1311, %v1317
        %s1322 = scalar_lea.vmem %s705, 16 [#allocation20]
        %1323 = vst.msk [vmem:[%s1322] sm:$0xff] %vm904, %v1320
        %1324 = vst.msk [vmem:[%s1322 + $0x8] sm:$0xff] %vm904, %v1321
        %s1325 = sand.u32 %s390, 1
        %s1326 = scalar_lea.sflag [#allocation4], %s1325
        %s1327 = sand.u32 %s390, 1
        %s1328 = smul.addr %s1327, 32
        %s1329 = scalar_lea.vmem [#allocation20], %s1328
        // Predicated region
        $region129: #{tpu_custom_call.1} parent=83 // pred_check
          %p1330 = pneg %p400
        $region130: #{tpu_custom_call.1} parent=83 // pred_check_branch
          %1332 = sbr.rel (%p1330) target = $region132
        $region131: #{tpu_custom_call.1} parent=83 // pred_region
          %s1333 = smul.u32 2, %s36
          %1335 = vsyncadd %s1326, 0
          %s1336 = smul.addr %s1333, 2
          %s1337 = smul.addr %s1336, 8
          %s1338 = scalar_lea.hbm %s16, %s1337
          %s1339 = sshll.u32 %s1329, 4
          %s1340 = int_to_ptr.vmem [resolvable:$true] %s1339
          %s1341 = sshll.u32 %s1338, 4
          %s1342 = int_to_ptr.hbm [resolvable:$true] %s1341
          %1347 = dma.vmem_to_hbm [thread:$0]  %s1340, 512, %s1342, %s1326, 128, 128, 8
        $region132: #{tpu_custom_call.1} parent=83 // pred_fallthru
          _
      $region84: #{tpu_custom_call.1} parent=5 // pred_fallthru
        _
      %p1348 = scmp.le.s32.totalorder 2, %s31
      // Predicated region
      $region133: #{tpu_custom_call.1} parent=5 // pred_check
        %p1349 = pneg %p1348
      $region134: #{tpu_custom_call.1} parent=5 // pred_check_branch
        %1351 = sbr.rel (%p1349) target = $region136
      $region135: #{tpu_custom_call.1} parent=5 // pred_region
        %s1352 = ssub.s32 %s31, 2
        // Predicated region
        $region137: #{tpu_custom_call.1} parent=135 // pred_check
          %p1353 = pneg %p406
        $region138: #{tpu_custom_call.1} parent=135 // pred_check_branch
          %1355 = sbr.rel (%p1353) target = $region140
        $region139: #{tpu_custom_call.1} parent=135 // pred_region
          %s1356 = sand.u32 %s391, 1
          %s1357 = scalar_lea.sflag [#allocation4], %s1356
          %s1358 = sand.u32 %s391, 1
          %s1359 = smul.addr %s1358, 32
          %s1360 = scalar_lea.vmem [#allocation20], %s1359
          %1362 = dma.done %s1357, 512
        $region140: #{tpu_custom_call.1} parent=135 // pred_fallthru
          _
      $region136: #{tpu_custom_call.1} parent=5 // pred_fallthru
        _
    $region6: #{tpu_custom_call.1} parent=1 // loop_footer
      %s35 = sadd.s32 1, %s31
    $region7: #{tpu_custom_call.1} parent=1 // loop_footer_branch
      %30 = sbr.rel target = $region3
    $region8: #{tpu_custom_call.1} parent=1 // loop_exit
      _
    %1363 = vsyncpa [#allocation3], 1
    %s1364 = scalar_lea.sflag [#allocation3], 1
    %1365 = vsyncpa %s1364, 1
    %1366 = vsyncpa [#allocation6], 1
    %1367 = vsyncpa [#allocation9], 1
    %1368 = vsyncpa [#allocation12], 1
    %1369 = vsyncpa [#allocation15], 1
    %1370 = vsyncpa [#allocation18], 1
    %1371 = vsyncpa [#allocation4], 1
    %s1372 = scalar_lea.sflag [#allocation4], 1
    %1373 = vsyncpa %s1372, 1

</llo_original>
